<compile_context>
chip_gen: v6e
topology: v6e:2x2x1
jax: 0.10.0
libtpu: 0.0.40
codegen_flags: <defaults>
</compile_context>

<pallas_src>
import jax
import jax.numpy as jnp
from jax.experimental import pallas as pl
from jax.experimental.pallas import tpu as pltpu

INPUT_SIZE = 2
H1, H2, H3, H4 = 30, 100, 20, 1
LANE = 128  # pad hidden feature dims to one full lane width


def mlp_kernel(x_ref,
               w1_ref, b1_ref,
               w2_ref, b2_ref,
               w3_ref, b3_ref,
               w4_ref, b4_ref,
               o_ref):
    x = x_ref[...]                                   # (BM, 2) f32

    # Layer 1 (K=2): two VPU broadcast-FMAs against w1's real rows -- cheaper and
    # lower-traffic than a padded 128x128 MXU pass.
    h = x[:, 0:1] * w1_ref[0:1, :] + x[:, 1:2] * w1_ref[1:2, :] + b1_ref[...]
    h = jnp.maximum(h, 0.0)                          # (BM, 128) f32, lanes >= 30 are exactly 0

    # Layers 2-4: lane-dense (BM,128) activations, bf16 MXU matmuls, f32 accumulation.
    h = jnp.dot(h.astype(jnp.bfloat16), w2_ref[...],
                preferred_element_type=jnp.float32) + b2_ref[...]
    h = jnp.maximum(h, 0.0)

    h = jnp.dot(h.astype(jnp.bfloat16), w3_ref[...],
                preferred_element_type=jnp.float32) + b3_ref[...]
    h = jnp.maximum(h, 0.0)

    logit = jnp.dot(h.astype(jnp.bfloat16), w4_ref[...],
                    preferred_element_type=jnp.float32) + b4_ref[...]   # (BM, 128), col 0 real

    # TODO(synk): torch forward calls print(out) before sigmoid; no clean in-kernel equivalent.
    logit = jnp.clip(logit[:, 0:1], -30.0, 30.0)     # (BM, 1); clamp avoids exp overflow
    e = jnp.exp(-logit)                              # EUP
    o_ref[...] = 1.0 / (1.0 + e)                     # exact sigmoid; EUP is not the bottleneck


def _pad2d(a, rows, cols, dtype):
    a = jnp.asarray(a, jnp.float32)
    a = jnp.pad(a, ((0, rows - a.shape[0]), (0, cols - a.shape[1])))
    return a.astype(dtype)


def neural_net_forward(x, params, *, block_batch=2048):
    """x: (batch, INPUT_SIZE) f32. params: [(w_k (in,out), b_k (1,out))]*4."""
    assert block_batch % 128 == 0, "block_batch must be a multiple of 128"
    (w1, b1), (w2, b2), (w3, b3), (w4, b4) = params
    batch = x.shape[0]

    # Adaptive tiling: MXU-friendly 128-row granularity, never blow a tiny batch up to the
    # full tile, bm always divides padded_batch.
    rows = 128 * pl.cdiv(batch, 128)
    bm = min(block_batch, rows)
    padded_batch = bm * pl.cdiv(rows, bm)

    # Input stays narrow: (padded_batch, 2) f32 (legal block: last dim == full array dim).
    xp = jnp.zeros((padded_batch, INPUT_SIZE), jnp.float32).at[:batch, :].set(
        x.astype(jnp.float32))

    # Zero-padded weights/biases: padded lanes/rows are exactly zero, so padded activation
    # lanes stay 0 through every layer and never contaminate real outputs.
    w1p = _pad2d(w1, INPUT_SIZE, LANE, jnp.float32)   # (2, 128)   f32 (VPU layer)
    b1p = _pad2d(b1, 1, LANE, jnp.float32)
    w2p = _pad2d(w2, LANE, LANE, jnp.bfloat16)        # (128, 128) bf16 (MXU layers)
    b2p = _pad2d(b2, 1, LANE, jnp.float32)
    w3p = _pad2d(w3, LANE, LANE, jnp.bfloat16)
    b3p = _pad2d(b3, 1, LANE, jnp.float32)
    w4p = _pad2d(w4, LANE, LANE, jnp.bfloat16)
    b4p = _pad2d(b4, 1, LANE, jnp.float32)

    x_spec = pl.BlockSpec((bm, INPUT_SIZE), lambda i: (i, 0))
    w1_spec = pl.BlockSpec((INPUT_SIZE, LANE), lambda i: (0, 0))  # resident across grid steps
    w_spec = pl.BlockSpec((LANE, LANE), lambda i: (0, 0))         # resident across grid steps
    b_spec = pl.BlockSpec((1, LANE), lambda i: (0, 0))            # resident across grid steps
    o_spec = pl.BlockSpec((bm, 1), lambda i: (i, 0))              # only the real output column

    out = pl.pallas_call(
        mlp_kernel,
        out_shape=jax.ShapeDtypeStruct((padded_batch, 1), jnp.float32),
        grid=(padded_batch // bm,),
        in_specs=[x_spec,
                  w1_spec, b_spec,
                  w_spec, b_spec,
                  w_spec, b_spec,
                  w_spec, b_spec],
        out_specs=o_spec,
        compiler_params=pltpu.CompilerParams(dimension_semantics=("parallel",)),
    )(xp, w1p, b1p, w2p, b2p, w3p, b3p, w4p, b4p)

    return out[:batch, :]


def init_params(key):
    """Deterministic init mimicking nn.Linear default: U(-1/sqrt(fan_in), 1/sqrt(fan_in))."""
    dims = [(INPUT_SIZE, H1), (H1, H2), (H2, H3), (H3, H4)]
    params = []
    for i, (fan_in, fan_out) in enumerate(dims):
        kw, kb = jax.random.split(jax.random.fold_in(key, i))
        bound = 1.0 / jnp.sqrt(float(fan_in))
        w = jax.random.uniform(kw, (fan_in, fan_out), jnp.float32, -bound, bound)
        b = jax.random.uniform(kb, (1, fan_out), jnp.float32, -bound, bound)
        params.append((w, b))
    return params


def reference_forward(x, params):
    """Pure f32 reference (matches the PyTorch module's math)."""
    h = x.astype(jnp.float32)
    for i, (w, b) in enumerate(params):
        h = h @ w + b
        if i < 3:
            h = jnp.maximum(h, 0.0)
    return 1.0 / (1.0 + jnp.exp(-h))


def reference_forward_bf16(x, params):
    """Mimics the kernel's arithmetic (bf16 matmul inputs, f32 accumulation) for a tight check."""
    (w1, b1) = params[0]
    h = x.astype(jnp.float32) @ w1.astype(jnp.float32) + b1
    h = jnp.maximum(h, 0.0)
    for i, (w, b) in enumerate(params[1:]):
        h = jnp.dot(h.astype(jnp.bfloat16), w.astype(jnp.bfloat16),
                    preferred_element_type=jnp.float32) + b
        if i < 2:
            h = jnp.maximum(h, 0.0)
    h = jnp.clip(h, -30.0, 30.0)
    return 1.0 / (1.0 + jnp.exp(-h))


if __name__ == "__main__":
    key = jax.random.PRNGKey(0)
    params = init_params(key)

    # Small shape consistent with the original script (two length-100 series -> (200, 2)).
    batch = 200
    x = jax.random.normal(jax.random.fold_in(key, 99), (batch, INPUT_SIZE), jnp.float32)

    out = neural_net_forward(x, params)
    jax.block_until_ready(out)

    assert out.shape == (batch, H4)
    assert bool(jnp.all((out >= 0.0) & (out <= 1.0)))

    ref_mimic = reference_forward_bf16(x, params)   # tight: same arithmetic as the kernel
    ref_f32 = reference_forward(x, params)          # loose: pure f32 PyTorch-equivalent math
    assert bool(jnp.allclose(out, ref_mimic, rtol=2e-3, atol=2e-3)), "mismatch vs bf16-mimic ref"
    assert bool(jnp.allclose(out, ref_f32, rtol=5e-3, atol=5e-3)), "mismatch vs f32 reference"

    # Exercise the multi-step grid path (grid > 1, batch not a multiple of the tile).
    batch2 = 2500
    x2 = jax.random.normal(jax.random.fold_in(key, 7), (batch2, INPUT_SIZE), jnp.float32)
    out2 = neural_net_forward(x2, params, block_batch=1024)
    jax.block_until_ready(out2)
    assert out2.shape == (batch2, H4)
    assert bool(jnp.allclose(out2, reference_forward(x2, params), rtol=5e-3, atol=5e-3)), \
        "mismatch vs f32 reference (tiled path)"

    print("KERNEL_OK")
</pallas_src>

<mosaic_0001>
module attributes {stable_mosaic.version = 11 : i64} {
  func.func @mlp_kernel(%arg0: i32, %arg1: memref<256x2xf32, #tpu.memory_space<vmem>>, %arg2: memref<2x128xf32, #tpu.memory_space<vmem>>, %arg3: memref<1x128xf32, #tpu.memory_space<vmem>>, %arg4: memref<128x128xbf16, #tpu.memory_space<vmem>>, %arg5: memref<1x128xf32, #tpu.memory_space<vmem>>, %arg6: memref<128x128xbf16, #tpu.memory_space<vmem>>, %arg7: memref<1x128xf32, #tpu.memory_space<vmem>>, %arg8: memref<128x128xbf16, #tpu.memory_space<vmem>>, %arg9: memref<1x128xf32, #tpu.memory_space<vmem>>, %arg10: memref<256x1xf32, #tpu.memory_space<vmem>>) attributes {dimension_semantics = [#tpu.dimension_semantics<parallel>], iteration_bounds = array<i64: 1>, scalar_prefetch = 0 : i64, scratch_operands = 0 : i64, tpu.core_type = #tpu.core_type<tc>, window_params = [{transform_indices = @transform_0, window_bounds = array<i64: 256, 2>}, {pipeline_mode = #tpu.pipeline_mode<synchronous>, transform_indices = @transform_1, window_bounds = array<i64: 2, 128>}, {pipeline_mode = #tpu.pipeline_mode<synchronous>, transform_indices = @transform_2, window_bounds = array<i64: 1, 128>}, {pipeline_mode = #tpu.pipeline_mode<synchronous>, transform_indices = @transform_3, window_bounds = array<i64: 128, 128>}, {pipeline_mode = #tpu.pipeline_mode<synchronous>, transform_indices = @transform_4, window_bounds = array<i64: 1, 128>}, {pipeline_mode = #tpu.pipeline_mode<synchronous>, transform_indices = @transform_5, window_bounds = array<i64: 128, 128>}, {pipeline_mode = #tpu.pipeline_mode<synchronous>, transform_indices = @transform_6, window_bounds = array<i64: 1, 128>}, {pipeline_mode = #tpu.pipeline_mode<synchronous>, transform_indices = @transform_7, window_bounds = array<i64: 128, 128>}, {pipeline_mode = #tpu.pipeline_mode<synchronous>, transform_indices = @transform_8, window_bounds = array<i64: 1, 128>}, {transform_indices = @transform_9, window_bounds = array<i64: 256, 1>}]} {
    %c0 = arith.constant 0 : index
    %c0_0 = arith.constant 0 : index
    %0 = vector.load %arg1[%c0, %c0_0] : memref<256x2xf32, #tpu.memory_space<vmem>>, vector<256x2xf32>
    %1 = vector.extract_strided_slice %0 {offsets = [0, 0], sizes = [256, 1], strides = [1, 1]} : vector<256x2xf32> to vector<256x1xf32>
    %c0_1 = arith.constant 0 : index
    %c0_2 = arith.constant 0 : index
    %2 = vector.load %arg2[%c0_1, %c0_2] : memref<2x128xf32, #tpu.memory_space<vmem>>, vector<1x128xf32>
    %3 = vector.broadcast %1 : vector<256x1xf32> to vector<256x128xf32>
    %4 = vector.broadcast %2 : vector<1x128xf32> to vector<256x128xf32>
    %5 = arith.mulf %3, %4 : vector<256x128xf32>
    %6 = vector.extract_strided_slice %0 {offsets = [0, 1], sizes = [256, 1], strides = [1, 1]} : vector<256x2xf32> to vector<256x1xf32>
    %c1 = arith.constant 1 : index
    %c0_3 = arith.constant 0 : index
    %7 = vector.load %arg2[%c1, %c0_3] : memref<2x128xf32, #tpu.memory_space<vmem>>, vector<1x128xf32>
    %8 = vector.broadcast %6 : vector<256x1xf32> to vector<256x128xf32>
    %9 = vector.broadcast %7 : vector<1x128xf32> to vector<256x128xf32>
    %10 = arith.mulf %8, %9 : vector<256x128xf32>
    %11 = arith.addf %5, %10 : vector<256x128xf32>
    %c0_4 = arith.constant 0 : index
    %c0_5 = arith.constant 0 : index
    %12 = vector.load %arg3[%c0_4, %c0_5] : memref<1x128xf32, #tpu.memory_space<vmem>>, vector<1x128xf32>
    %13 = vector.broadcast %12 : vector<1x128xf32> to vector<256x128xf32>
    %14 = arith.addf %11, %13 : vector<256x128xf32>
    %cst = arith.constant 0.000000e+00 : f32
    %15 = vector.broadcast %cst : f32 to vector<256x128xf32>
    %16 = arith.maximumf %14, %15 : vector<256x128xf32>
    %17 = arith.truncf %16 : vector<256x128xf32> to vector<256x128xbf16>
    %c0_6 = arith.constant 0 : index
    %c0_7 = arith.constant 0 : index
    %18 = vector.load %arg4[%c0_6, %c0_7] : memref<128x128xbf16, #tpu.memory_space<vmem>>, vector<128x128xbf16>
    %cst_8 = arith.constant dense<0.000000e+00> : vector<256x128xf32>
    %19 = tpu.matmul %17, %18, %cst_8 {dimension_numbers = #tpu.dot_dimension_numbers<[1], [0], [0], [1], [0, 0, 1, 1], [], []>} : vector<256x128xbf16>, vector<128x128xbf16>, vector<256x128xf32> -> vector<256x128xf32>
    %c0_9 = arith.constant 0 : index
    %c0_10 = arith.constant 0 : index
    %20 = vector.load %arg5[%c0_9, %c0_10] : memref<1x128xf32, #tpu.memory_space<vmem>>, vector<1x128xf32>
    %21 = vector.broadcast %20 : vector<1x128xf32> to vector<256x128xf32>
    %22 = arith.addf %19, %21 : vector<256x128xf32>
    %cst_11 = arith.constant 0.000000e+00 : f32
    %23 = vector.broadcast %cst_11 : f32 to vector<256x128xf32>
    %24 = arith.maximumf %22, %23 : vector<256x128xf32>
    %25 = arith.truncf %24 : vector<256x128xf32> to vector<256x128xbf16>
    %c0_12 = arith.constant 0 : index
    %c0_13 = arith.constant 0 : index
    %26 = vector.load %arg6[%c0_12, %c0_13] : memref<128x128xbf16, #tpu.memory_space<vmem>>, vector<128x128xbf16>
    %cst_14 = arith.constant dense<0.000000e+00> : vector<256x128xf32>
    %27 = tpu.matmul %25, %26, %cst_14 {dimension_numbers = #tpu.dot_dimension_numbers<[1], [0], [0], [1], [0, 0, 1, 1], [], []>} : vector<256x128xbf16>, vector<128x128xbf16>, vector<256x128xf32> -> vector<256x128xf32>
    %c0_15 = arith.constant 0 : index
    %c0_16 = arith.constant 0 : index
    %28 = vector.load %arg7[%c0_15, %c0_16] : memref<1x128xf32, #tpu.memory_space<vmem>>, vector<1x128xf32>
    %29 = vector.broadcast %28 : vector<1x128xf32> to vector<256x128xf32>
    %30 = arith.addf %27, %29 : vector<256x128xf32>
    %cst_17 = arith.constant 0.000000e+00 : f32
    %31 = vector.broadcast %cst_17 : f32 to vector<256x128xf32>
    %32 = arith.maximumf %30, %31 : vector<256x128xf32>
    %33 = arith.truncf %32 : vector<256x128xf32> to vector<256x128xbf16>
    %c0_18 = arith.constant 0 : index
    %c0_19 = arith.constant 0 : index
    %34 = vector.load %arg8[%c0_18, %c0_19] : memref<128x128xbf16, #tpu.memory_space<vmem>>, vector<128x128xbf16>
    %cst_20 = arith.constant dense<0.000000e+00> : vector<256x128xf32>
    %35 = tpu.matmul %33, %34, %cst_20 {dimension_numbers = #tpu.dot_dimension_numbers<[1], [0], [0], [1], [0, 0, 1, 1], [], []>} : vector<256x128xbf16>, vector<128x128xbf16>, vector<256x128xf32> -> vector<256x128xf32>
    %c0_21 = arith.constant 0 : index
    %c0_22 = arith.constant 0 : index
    %36 = vector.load %arg9[%c0_21, %c0_22] : memref<1x128xf32, #tpu.memory_space<vmem>>, vector<1x128xf32>
    %37 = vector.broadcast %36 : vector<1x128xf32> to vector<256x128xf32>
    %38 = arith.addf %35, %37 : vector<256x128xf32>
    %39 = vector.extract_strided_slice %38 {offsets = [0, 0], sizes = [256, 1], strides = [1, 1]} : vector<256x128xf32> to vector<256x1xf32>
    %cst_23 = arith.constant -3.000000e+01 : f32
    %cst_24 = arith.constant 3.000000e+01 : f32
    %40 = vector.broadcast %cst_23 : f32 to vector<256x1xf32>
    %41 = arith.maximumf %40, %39 : vector<256x1xf32>
    %42 = vector.broadcast %cst_24 : f32 to vector<256x1xf32>
    %43 = arith.minimumf %42, %41 : vector<256x1xf32>
    %cst_25 = arith.constant 0.000000e+00 : f32
    %44 = vector.broadcast %cst_25 : f32 to vector<256x1xf32>
    %45 = arith.subf %44, %43 : vector<256x1xf32>
    %46 = math.exp %45 : vector<256x1xf32>
    %cst_26 = arith.constant 1.000000e+00 : f32
    %47 = vector.broadcast %cst_26 : f32 to vector<256x1xf32>
    %48 = arith.addf %47, %46 : vector<256x1xf32>
    %cst_27 = arith.constant 1.000000e+00 : f32
    %49 = vector.broadcast %cst_27 : f32 to vector<256x1xf32>
    %50 = arith.divf %49, %48 : vector<256x1xf32>
    %c0_28 = arith.constant 0 : index
    %c0_29 = arith.constant 0 : index
    %51 = vector.load %arg10[%c0_28, %c0_29] : memref<256x1xf32, #tpu.memory_space<vmem>>, vector<256x1xf32>
    tpu.vector_store %arg10[%c0_28, %c0_29], %50 {strides = array<i32>} : memref<256x1xf32, #tpu.memory_space<vmem>>, vector<256x1xf32>,
    return
  }
  func.func @transform_0(%arg0: i32) -> (i32, i32) {
    %c0_i32 = arith.constant 0 : i32
    %c0_i32_0 = arith.constant 0 : i32
    return %arg0, %c0_i32 : i32, i32
  }
  func.func @transform_1(%arg0: i32) -> (i32, i32) {
    %c0_i32 = arith.constant 0 : i32
    %c0_i32_0 = arith.constant 0 : i32
    %c0_i32_1 = arith.constant 0 : i32
    return %c0_i32, %c0_i32_0 : i32, i32
  }
  func.func @transform_2(%arg0: i32) -> (i32, i32) {
    %c0_i32 = arith.constant 0 : i32
    %c0_i32_0 = arith.constant 0 : i32
    %c0_i32_1 = arith.constant 0 : i32
    return %c0_i32, %c0_i32_0 : i32, i32
  }
  func.func @transform_3(%arg0: i32) -> (i32, i32) {
    %c0_i32 = arith.constant 0 : i32
    %c0_i32_0 = arith.constant 0 : i32
    %c0_i32_1 = arith.constant 0 : i32
    return %c0_i32, %c0_i32_0 : i32, i32
  }
  func.func @transform_4(%arg0: i32) -> (i32, i32) {
    %c0_i32 = arith.constant 0 : i32
    %c0_i32_0 = arith.constant 0 : i32
    %c0_i32_1 = arith.constant 0 : i32
    return %c0_i32, %c0_i32_0 : i32, i32
  }
  func.func @transform_5(%arg0: i32) -> (i32, i32) {
    %c0_i32 = arith.constant 0 : i32
    %c0_i32_0 = arith.constant 0 : i32
    %c0_i32_1 = arith.constant 0 : i32
    return %c0_i32, %c0_i32_0 : i32, i32
  }
  func.func @transform_6(%arg0: i32) -> (i32, i32) {
    %c0_i32 = arith.constant 0 : i32
    %c0_i32_0 = arith.constant 0 : i32
    %c0_i32_1 = arith.constant 0 : i32
    return %c0_i32, %c0_i32_0 : i32, i32
  }
  func.func @transform_7(%arg0: i32) -> (i32, i32) {
    %c0_i32 = arith.constant 0 : i32
    %c0_i32_0 = arith.constant 0 : i32
    %c0_i32_1 = arith.constant 0 : i32
    return %c0_i32, %c0_i32_0 : i32, i32
  }
  func.func @transform_8(%arg0: i32) -> (i32, i32) {
    %c0_i32 = arith.constant 0 : i32
    %c0_i32_0 = arith.constant 0 : i32
    %c0_i32_1 = arith.constant 0 : i32
    return %c0_i32, %c0_i32_0 : i32, i32
  }
  func.func @transform_9(%arg0: i32) -> (i32, i32) {
    %c0_i32 = arith.constant 0 : i32
    %c0_i32_0 = arith.constant 0 : i32
    return %arg0, %c0_i32 : i32, i32
  }
}

</mosaic_0001>

<llo_original>
// kernel: tpu_custom_call.1
$region0: #{tpu_custom_call.1}
  #allocation0 [shape = 'u32[]', space=smem, size = 0x4, offset = 0x4, fixed_abs, tag = 'smem constant byte address 0x4 - core index']
  #allocation1 [shape = 'u32[144,128]{1,0:T(1,128)}', space=vmem, size = 0x12000, scoped, tag = 'internal scratch']
  %s0 = inlined_call_operand.vmem [shape: f32[256,2], index: 0, kind: input, shape index: {}]
  %s1 = inlined_call_operand.vmem [shape: f32[2,128], index: 1, kind: input, shape index: {}]
  %s2 = inlined_call_operand.vmem [shape: f32[1,128], index: 2, kind: input, shape index: {}]
  %s3 = inlined_call_operand.vmem [shape: bf16[128,128], index: 3, kind: input, shape index: {}]
  %s4 = inlined_call_operand.vmem [shape: f32[1,128], index: 4, kind: input, shape index: {}]
  %s5 = inlined_call_operand.vmem [shape: bf16[128,128], index: 5, kind: input, shape index: {}]
  %s6 = inlined_call_operand.vmem [shape: f32[1,128], index: 6, kind: input, shape index: {}]
  %s7 = inlined_call_operand.vmem [shape: bf16[128,128], index: 7, kind: input, shape index: {}]
  %s8 = inlined_call_operand.vmem [shape: f32[1,128], index: 8, kind: input, shape index: {}]
  %s9 = inlined_call_operand.vmem [shape: f32[256,1], index: 9, kind: output, shape index: {}]
  %s10 = sld [smem:[#allocation0]]
  $region46: #{tpu_custom_call.1} parent=0
    _
  %s12 = ssub.s32 1, %s10
  %s13 = scalar_select 0, %s12, %s10
  // Predicated region
  $region2: #{tpu_custom_call.1} parent=0 // pred_check
    _
  $region3: #{tpu_custom_call.1} parent=0 // pred_check_branch
    %15 = sbr.rel (0) target = $region5
  $region4: #{tpu_custom_call.1} parent=0 // pred_region
    _
  $region5: #{tpu_custom_call.1} parent=0 // pred_fallthru
    _
  // Predicated region
  $region6: #{tpu_custom_call.1} parent=0 // pred_check
    _
  $region7: #{tpu_custom_call.1} parent=0 // pred_check_branch
    %17 = sbr.rel (0) target = $region9
  $region8: #{tpu_custom_call.1} parent=0 // pred_region
    _
  $region9: #{tpu_custom_call.1} parent=0 // pred_fallthru
    _
  // Predicated region
  $region10: #{tpu_custom_call.1} parent=0 // pred_check
    _
  $region11: #{tpu_custom_call.1} parent=0 // pred_check_branch
    %19 = sbr.rel (0) target = $region13
  $region12: #{tpu_custom_call.1} parent=0 // pred_region
    _
  $region13: #{tpu_custom_call.1} parent=0 // pred_fallthru
    _
  // Predicated region
  $region14: #{tpu_custom_call.1} parent=0 // pred_check
    _
  $region15: #{tpu_custom_call.1} parent=0 // pred_check_branch
    %21 = sbr.rel (0) target = $region17
  $region16: #{tpu_custom_call.1} parent=0 // pred_region
    _
  $region17: #{tpu_custom_call.1} parent=0 // pred_fallthru
    _
  // Predicated region
  $region18: #{tpu_custom_call.1} parent=0 // pred_check
    _
  $region19: #{tpu_custom_call.1} parent=0 // pred_check_branch
    %23 = sbr.rel (0) target = $region21
  $region20: #{tpu_custom_call.1} parent=0 // pred_region
    _
  $region21: #{tpu_custom_call.1} parent=0 // pred_fallthru
    _
  // Predicated region
  $region22: #{tpu_custom_call.1} parent=0 // pred_check
    _
  $region23: #{tpu_custom_call.1} parent=0 // pred_check_branch
    %25 = sbr.rel (0) target = $region25
  $region24: #{tpu_custom_call.1} parent=0 // pred_region
    _
  $region25: #{tpu_custom_call.1} parent=0 // pred_fallthru
    _
  // Predicated region
  $region26: #{tpu_custom_call.1} parent=0 // pred_check
    _
  $region27: #{tpu_custom_call.1} parent=0 // pred_check_branch
    %27 = sbr.rel (0) target = $region29
  $region28: #{tpu_custom_call.1} parent=0 // pred_region
    _
  $region29: #{tpu_custom_call.1} parent=0 // pred_fallthru
    _
  // Predicated region
  $region30: #{tpu_custom_call.1} parent=0 // pred_check
    _
  $region31: #{tpu_custom_call.1} parent=0 // pred_check_branch
    %29 = sbr.rel (0) target = $region33
  $region32: #{tpu_custom_call.1} parent=0 // pred_region
    _
  $region33: #{tpu_custom_call.1} parent=0 // pred_fallthru
    _
  // Predicated region
  $region34: #{tpu_custom_call.1} parent=0 // pred_check
    _
  $region35: #{tpu_custom_call.1} parent=0 // pred_check_branch
    %31 = sbr.rel (0) target = $region37
  $region36: #{tpu_custom_call.1} parent=0 // pred_region
    _
  $region37: #{tpu_custom_call.1} parent=0 // pred_fallthru
    _
  %v33 = vld [vmem:[%s0] sm:$0xff]
  %v34 = vld [vmem:[%s0 + $0x8] sm:$0xff]
  %v35 = vld [vmem:[%s0 + $0x10] sm:$0xff]
  %v36 = vld [vmem:[%s0 + $0x18] sm:$0xff]
  %v37 = vld [vmem:[%s0 + $0x20] sm:$0xff]
  %v38 = vld [vmem:[%s0 + $0x28] sm:$0xff]
  %v39 = vld [vmem:[%s0 + $0x30] sm:$0xff]
  %v40 = vld [vmem:[%s0 + $0x38] sm:$0xff]
  %v41 = vld [vmem:[%s0 + $0x40] sm:$0xff]
  %v42 = vld [vmem:[%s0 + $0x48] sm:$0xff]
  %v43 = vld [vmem:[%s0 + $0x50] sm:$0xff]
  %v44 = vld [vmem:[%s0 + $0x58] sm:$0xff]
  %v45 = vld [vmem:[%s0 + $0x60] sm:$0xff]
  %v46 = vld [vmem:[%s0 + $0x68] sm:$0xff]
  %v47 = vld [vmem:[%s0 + $0x70] sm:$0xff]
  %v48 = vld [vmem:[%s0 + $0x78] sm:$0xff]
  %v49 = vld [vmem:[%s0 + $0x80] sm:$0xff]
  %v50 = vld [vmem:[%s0 + $0x88] sm:$0xff]
  %v51 = vld [vmem:[%s0 + $0x90] sm:$0xff]
  %v52 = vld [vmem:[%s0 + $0x98] sm:$0xff]
  %v53 = vld [vmem:[%s0 + $0xa0] sm:$0xff]
  %v54 = vld [vmem:[%s0 + $0xa8] sm:$0xff]
  %v55 = vld [vmem:[%s0 + $0xb0] sm:$0xff]
  %v56 = vld [vmem:[%s0 + $0xb8] sm:$0xff]
  %v57 = vld [vmem:[%s0 + $0xc0] sm:$0xff]
  %v58 = vld [vmem:[%s0 + $0xc8] sm:$0xff]
  %v59 = vld [vmem:[%s0 + $0xd0] sm:$0xff]
  %v60 = vld [vmem:[%s0 + $0xd8] sm:$0xff]
  %v61 = vld [vmem:[%s0 + $0xe0] sm:$0xff]
  %v62 = vld [vmem:[%s0 + $0xe8] sm:$0xff]
  %v63 = vld [vmem:[%s0 + $0xf0] sm:$0xff]
  %v64 = vld [vmem:[%s0 + $0xf8] sm:$0xff]
  %v65 = vld [vmem:[%s1] sm:$0x1]
  %67 = vset.pattern.permute.xlu0 0
  %68 = vperm.xlu0 %67, %v33
  %v69 = vpop.permute.xlu0 %68
  %72 = vset.pattern.permute.xlu0 0
  %73 = vperm.xlu0 %72, %v34
  %v74 = vpop.permute.xlu0 %73
  %77 = vset.pattern.permute.xlu0 0
  %78 = vperm.xlu0 %77, %v35
  %v79 = vpop.permute.xlu0 %78
  %82 = vset.pattern.permute.xlu0 0
  %83 = vperm.xlu0 %82, %v36
  %v84 = vpop.permute.xlu0 %83
  %87 = vset.pattern.permute.xlu0 0
  %88 = vperm.xlu0 %87, %v37
  %v89 = vpop.permute.xlu0 %88
  %92 = vset.pattern.permute.xlu0 0
  %93 = vperm.xlu0 %92, %v38
  %v94 = vpop.permute.xlu0 %93
  %97 = vset.pattern.permute.xlu0 0
  %98 = vperm.xlu0 %97, %v39
  %v99 = vpop.permute.xlu0 %98
  %102 = vset.pattern.permute.xlu0 0
  %103 = vperm.xlu0 %102, %v40
  %v104 = vpop.permute.xlu0 %103
  %107 = vset.pattern.permute.xlu0 0
  %108 = vperm.xlu0 %107, %v41
  %v109 = vpop.permute.xlu0 %108
  %112 = vset.pattern.permute.xlu0 0
  %113 = vperm.xlu0 %112, %v42
  %v114 = vpop.permute.xlu0 %113
  %117 = vset.pattern.permute.xlu0 0
  %118 = vperm.xlu0 %117, %v43
  %v119 = vpop.permute.xlu0 %118
  %122 = vset.pattern.permute.xlu0 0
  %123 = vperm.xlu0 %122, %v44
  %v124 = vpop.permute.xlu0 %123
  %127 = vset.pattern.permute.xlu0 0
  %128 = vperm.xlu0 %127, %v45
  %v129 = vpop.permute.xlu0 %128
  %132 = vset.pattern.permute.xlu0 0
  %133 = vperm.xlu0 %132, %v46
  %v134 = vpop.permute.xlu0 %133
  %137 = vset.pattern.permute.xlu0 0
  %138 = vperm.xlu0 %137, %v47
  %v139 = vpop.permute.xlu0 %138
  %142 = vset.pattern.permute.xlu0 0
  %143 = vperm.xlu0 %142, %v48
  %v144 = vpop.permute.xlu0 %143
  %147 = vset.pattern.permute.xlu0 0
  %148 = vperm.xlu0 %147, %v49
  %v149 = vpop.permute.xlu0 %148
  %152 = vset.pattern.permute.xlu0 0
  %153 = vperm.xlu0 %152, %v50
  %v154 = vpop.permute.xlu0 %153
  %157 = vset.pattern.permute.xlu0 0
  %158 = vperm.xlu0 %157, %v51
  %v159 = vpop.permute.xlu0 %158
  %162 = vset.pattern.permute.xlu0 0
  %163 = vperm.xlu0 %162, %v52
  %v164 = vpop.permute.xlu0 %163
  %167 = vset.pattern.permute.xlu0 0
  %168 = vperm.xlu0 %167, %v53
  %v169 = vpop.permute.xlu0 %168
  %172 = vset.pattern.permute.xlu0 0
  %173 = vperm.xlu0 %172, %v54
  %v174 = vpop.permute.xlu0 %173
  %177 = vset.pattern.permute.xlu0 0
  %178 = vperm.xlu0 %177, %v55
  %v179 = vpop.permute.xlu0 %178
  %182 = vset.pattern.permute.xlu0 0
  %183 = vperm.xlu0 %182, %v56
  %v184 = vpop.permute.xlu0 %183
  %187 = vset.pattern.permute.xlu0 0
  %188 = vperm.xlu0 %187, %v57
  %v189 = vpop.permute.xlu0 %188
  %192 = vset.pattern.permute.xlu0 0
  %193 = vperm.xlu0 %192, %v58
  %v194 = vpop.permute.xlu0 %193
  %197 = vset.pattern.permute.xlu0 0
  %198 = vperm.xlu0 %197, %v59
  %v199 = vpop.permute.xlu0 %198
  %202 = vset.pattern.permute.xlu0 0
  %203 = vperm.xlu0 %202, %v60
  %v204 = vpop.permute.xlu0 %203
  %207 = vset.pattern.permute.xlu0 0
  %208 = vperm.xlu0 %207, %v61
  %v209 = vpop.permute.xlu0 %208
  %212 = vset.pattern.permute.xlu0 0
  %213 = vperm.xlu0 %212, %v62
  %v214 = vpop.permute.xlu0 %213
  %217 = vset.pattern.permute.xlu0 0
  %218 = vperm.xlu0 %217, %v63
  %v219 = vpop.permute.xlu0 %218
  %222 = vset.pattern.permute.xlu0 0
  %223 = vperm.xlu0 %222, %v64
  %v224 = vpop.permute.xlu0 %223
  %v226 = vlaneseq
  %v227 = vshrl.u32 %v226, 7
  %v228 = vsub.s32 0, %v227
  %v229 = vrot.slane %v65, %v228
  %v230 = vmul.f32 %v69, %v229
  %v231 = vmul.f32 %v74, %v229
  %v232 = vmul.f32 %v79, %v229
  %v233 = vmul.f32 %v84, %v229
  %v234 = vmul.f32 %v89, %v229
  %v235 = vmul.f32 %v94, %v229
  %v236 = vmul.f32 %v99, %v229
  %v237 = vmul.f32 %v104, %v229
  %v238 = vmul.f32 %v109, %v229
  %v239 = vmul.f32 %v114, %v229
  %v240 = vmul.f32 %v119, %v229
  %v241 = vmul.f32 %v124, %v229
  %v242 = vmul.f32 %v129, %v229
  %v243 = vmul.f32 %v134, %v229
  %v244 = vmul.f32 %v139, %v229
  %v245 = vmul.f32 %v144, %v229
  %v246 = vmul.f32 %v149, %v229
  %v247 = vmul.f32 %v154, %v229
  %v248 = vmul.f32 %v159, %v229
  %v249 = vmul.f32 %v164, %v229
  %v250 = vmul.f32 %v169, %v229
  %v251 = vmul.f32 %v174, %v229
  %v252 = vmul.f32 %v179, %v229
  %v253 = vmul.f32 %v184, %v229
  %v254 = vmul.f32 %v189, %v229
  %v255 = vmul.f32 %v194, %v229
  %v256 = vmul.f32 %v199, %v229
  %v257 = vmul.f32 %v204, %v229
  %v258 = vmul.f32 %v209, %v229
  %v259 = vmul.f32 %v214, %v229
  %v260 = vmul.f32 %v219, %v229
  %v261 = vmul.f32 %v224, %v229
  %v262 = vld [vmem:[%s1 + $0x1] sm:$0x1]
  %263 = vset.pattern.permute.xlu0 1
  %264 = vperm.xlu0 %263, %v33
  %v265 = vpop.permute.xlu0 %264
  %267 = vset.pattern.permute.xlu0 1
  %268 = vperm.xlu0 %267, %v34
  %v269 = vpop.permute.xlu0 %268
  %271 = vset.pattern.permute.xlu0 1
  %272 = vperm.xlu0 %271, %v35
  %v273 = vpop.permute.xlu0 %272
  %275 = vset.pattern.permute.xlu0 1
  %276 = vperm.xlu0 %275, %v36
  %v277 = vpop.permute.xlu0 %276
  %279 = vset.pattern.permute.xlu0 1
  %280 = vperm.xlu0 %279, %v37
  %v281 = vpop.permute.xlu0 %280
  %283 = vset.pattern.permute.xlu0 1
  %284 = vperm.xlu0 %283, %v38
  %v285 = vpop.permute.xlu0 %284
  %287 = vset.pattern.permute.xlu0 1
  %288 = vperm.xlu0 %287, %v39
  %v289 = vpop.permute.xlu0 %288
  %291 = vset.pattern.permute.xlu0 1
  %292 = vperm.xlu0 %291, %v40
  %v293 = vpop.permute.xlu0 %292
  %295 = vset.pattern.permute.xlu0 1
  %296 = vperm.xlu0 %295, %v41
  %v297 = vpop.permute.xlu0 %296
  %299 = vset.pattern.permute.xlu0 1
  %300 = vperm.xlu0 %299, %v42
  %v301 = vpop.permute.xlu0 %300
  %303 = vset.pattern.permute.xlu0 1
  %304 = vperm.xlu0 %303, %v43
  %v305 = vpop.permute.xlu0 %304
  %307 = vset.pattern.permute.xlu0 1
  %308 = vperm.xlu0 %307, %v44
  %v309 = vpop.permute.xlu0 %308
  %311 = vset.pattern.permute.xlu0 1
  %312 = vperm.xlu0 %311, %v45
  %v313 = vpop.permute.xlu0 %312
  %315 = vset.pattern.permute.xlu0 1
  %316 = vperm.xlu0 %315, %v46
  %v317 = vpop.permute.xlu0 %316
  %319 = vset.pattern.permute.xlu0 1
  %320 = vperm.xlu0 %319, %v47
  %v321 = vpop.permute.xlu0 %320
  %323 = vset.pattern.permute.xlu0 1
  %324 = vperm.xlu0 %323, %v48
  %v325 = vpop.permute.xlu0 %324
  %327 = vset.pattern.permute.xlu0 1
  %328 = vperm.xlu0 %327, %v49
  %v329 = vpop.permute.xlu0 %328
  %331 = vset.pattern.permute.xlu0 1
  %332 = vperm.xlu0 %331, %v50
  %v333 = vpop.permute.xlu0 %332
  %335 = vset.pattern.permute.xlu0 1
  %336 = vperm.xlu0 %335, %v51
  %v337 = vpop.permute.xlu0 %336
  %339 = vset.pattern.permute.xlu0 1
  %340 = vperm.xlu0 %339, %v52
  %v341 = vpop.permute.xlu0 %340
  %343 = vset.pattern.permute.xlu0 1
  %344 = vperm.xlu0 %343, %v53
  %v345 = vpop.permute.xlu0 %344
  %347 = vset.pattern.permute.xlu0 1
  %348 = vperm.xlu0 %347, %v54
  %v349 = vpop.permute.xlu0 %348
  %351 = vset.pattern.permute.xlu0 1
  %352 = vperm.xlu0 %351, %v55
  %v353 = vpop.permute.xlu0 %352
  %355 = vset.pattern.permute.xlu0 1
  %356 = vperm.xlu0 %355, %v56
  %v357 = vpop.permute.xlu0 %356
  %359 = vset.pattern.permute.xlu0 1
  %360 = vperm.xlu0 %359, %v57
  %v361 = vpop.permute.xlu0 %360
  %363 = vset.pattern.permute.xlu0 1
  %364 = vperm.xlu0 %363, %v58
  %v365 = vpop.permute.xlu0 %364
  %367 = vset.pattern.permute.xlu0 1
  %368 = vperm.xlu0 %367, %v59
  %v369 = vpop.permute.xlu0 %368
  %371 = vset.pattern.permute.xlu0 1
  %372 = vperm.xlu0 %371, %v60
  %v373 = vpop.permute.xlu0 %372
  %375 = vset.pattern.permute.xlu0 1
  %376 = vperm.xlu0 %375, %v61
  %v377 = vpop.permute.xlu0 %376
  %379 = vset.pattern.permute.xlu0 1
  %380 = vperm.xlu0 %379, %v62
  %v381 = vpop.permute.xlu0 %380
  %383 = vset.pattern.permute.xlu0 1
  %384 = vperm.xlu0 %383, %v63
  %v385 = vpop.permute.xlu0 %384
  %387 = vset.pattern.permute.xlu0 1
  %388 = vperm.xlu0 %387, %v64
  %v389 = vpop.permute.xlu0 %388
  %v391 = vlaneseq
  %v392 = vshrl.u32 %v391, 7
  %v393 = vsub.s32 0, %v392
  %v394 = vrot.slane %v262, %v393
  %v395 = vmul.f32 %v265, %v394
  %v396 = vmul.f32 %v269, %v394
  %v397 = vmul.f32 %v273, %v394
  %v398 = vmul.f32 %v277, %v394
  %v399 = vmul.f32 %v281, %v394
  %v400 = vmul.f32 %v285, %v394
  %v401 = vmul.f32 %v289, %v394
  %v402 = vmul.f32 %v293, %v394
  %v403 = vmul.f32 %v297, %v394
  %v404 = vmul.f32 %v301, %v394
  %v405 = vmul.f32 %v305, %v394
  %v406 = vmul.f32 %v309, %v394
  %v407 = vmul.f32 %v313, %v394
  %v408 = vmul.f32 %v317, %v394
  %v409 = vmul.f32 %v321, %v394
  %v410 = vmul.f32 %v325, %v394
  %v411 = vmul.f32 %v329, %v394
  %v412 = vmul.f32 %v333, %v394
  %v413 = vmul.f32 %v337, %v394
  %v414 = vmul.f32 %v341, %v394
  %v415 = vmul.f32 %v345, %v394
  %v416 = vmul.f32 %v349, %v394
  %v417 = vmul.f32 %v353, %v394
  %v418 = vmul.f32 %v357, %v394
  %v419 = vmul.f32 %v361, %v394
  %v420 = vmul.f32 %v365, %v394
  %v421 = vmul.f32 %v369, %v394
  %v422 = vmul.f32 %v373, %v394
  %v423 = vmul.f32 %v377, %v394
  %v424 = vmul.f32 %v381, %v394
  %v425 = vmul.f32 %v385, %v394
  %v426 = vmul.f32 %v389, %v394
  %v427 = vadd.f32 %v230, %v395
  %v428 = vadd.f32 %v231, %v396
  %v429 = vadd.f32 %v232, %v397
  %v430 = vadd.f32 %v233, %v398
  %v431 = vadd.f32 %v234, %v399
  %v432 = vadd.f32 %v235, %v400
  %v433 = vadd.f32 %v236, %v401
  %v434 = vadd.f32 %v237, %v402
  %v435 = vadd.f32 %v238, %v403
  %v436 = vadd.f32 %v239, %v404
  %v437 = vadd.f32 %v240, %v405
  %v438 = vadd.f32 %v241, %v406
  %v439 = vadd.f32 %v242, %v407
  %v440 = vadd.f32 %v243, %v408
  %v441 = vadd.f32 %v244, %v409
  %v442 = vadd.f32 %v245, %v410
  %v443 = vadd.f32 %v246, %v411
  %v444 = vadd.f32 %v247, %v412
  %v445 = vadd.f32 %v248, %v413
  %v446 = vadd.f32 %v249, %v414
  %v447 = vadd.f32 %v250, %v415
  %v448 = vadd.f32 %v251, %v416
  %v449 = vadd.f32 %v252, %v417
  %v450 = vadd.f32 %v253, %v418
  %v451 = vadd.f32 %v254, %v419
  %v452 = vadd.f32 %v255, %v420
  %v453 = vadd.f32 %v256, %v421
  %v454 = vadd.f32 %v257, %v422
  %v455 = vadd.f32 %v258, %v423
  %v456 = vadd.f32 %v259, %v424
  %v457 = vadd.f32 %v260, %v425
  %v458 = vadd.f32 %v261, %v426
  %v459 = vld [vmem:[%s2] sm:$0x1]
  %v461 = vlaneseq
  %v462 = vshrl.u32 %v461, 7
  %v463 = vsub.s32 0, %v462
  %v464 = vrot.slane %v459, %v463
  %v466 = vadd.f32 %v427, %v464
  %v467 = vadd.f32 %v428, %v464
  %v468 = vadd.f32 %v429, %v464
  %v469 = vadd.f32 %v430, %v464
  %v470 = vadd.f32 %v431, %v464
  %v471 = vadd.f32 %v432, %v464
  %v472 = vadd.f32 %v433, %v464
  %v473 = vadd.f32 %v434, %v464
  %v474 = vadd.f32 %v435, %v464
  %v475 = vadd.f32 %v436, %v464
  %v476 = vadd.f32 %v437, %v464
  %v477 = vadd.f32 %v438, %v464
  %v478 = vadd.f32 %v439, %v464
  %v479 = vadd.f32 %v440, %v464
  %v480 = vadd.f32 %v441, %v464
  %v481 = vadd.f32 %v442, %v464
  %v482 = vadd.f32 %v443, %v464
  %v483 = vadd.f32 %v444, %v464
  %v484 = vadd.f32 %v445, %v464
  %v485 = vadd.f32 %v446, %v464
  %v486 = vadd.f32 %v447, %v464
  %v487 = vadd.f32 %v448, %v464
  %v488 = vadd.f32 %v449, %v464
  %v489 = vadd.f32 %v450, %v464
  %v490 = vadd.f32 %v451, %v464
  %v491 = vadd.f32 %v452, %v464
  %v492 = vadd.f32 %v453, %v464
  %v493 = vadd.f32 %v454, %v464
  %v494 = vadd.f32 %v455, %v464
  %v495 = vadd.f32 %v456, %v464
  %v496 = vadd.f32 %v457, %v464
  %v497 = vadd.f32 %v458, %v464
  %v498 = vmax.f32 %v466, 0.0
  %v499 = vmax.f32 %v467, 0.0
  %v500 = vmax.f32 %v468, 0.0
  %v501 = vmax.f32 %v469, 0.0
  %v502 = vmax.f32 %v470, 0.0
  %v503 = vmax.f32 %v471, 0.0
  %v504 = vmax.f32 %v472, 0.0
  %v505 = vmax.f32 %v473, 0.0
  %v506 = vmax.f32 %v474, 0.0
  %v507 = vmax.f32 %v475, 0.0
  %v508 = vmax.f32 %v476, 0.0
  %v509 = vmax.f32 %v477, 0.0
  %v510 = vmax.f32 %v478, 0.0
  %v511 = vmax.f32 %v479, 0.0
  %v512 = vmax.f32 %v480, 0.0
  %v513 = vmax.f32 %v481, 0.0
  %v514 = vmax.f32 %v482, 0.0
  %v515 = vmax.f32 %v483, 0.0
  %v516 = vmax.f32 %v484, 0.0
  %v517 = vmax.f32 %v485, 0.0
  %v518 = vmax.f32 %v486, 0.0
  %v519 = vmax.f32 %v487, 0.0
  %v520 = vmax.f32 %v488, 0.0
  %v521 = vmax.f32 %v489, 0.0
  %v522 = vmax.f32 %v490, 0.0
  %v523 = vmax.f32 %v491, 0.0
  %v524 = vmax.f32 %v492, 0.0
  %v525 = vmax.f32 %v493, 0.0
  %v526 = vmax.f32 %v494, 0.0
  %v527 = vmax.f32 %v495, 0.0
  %v528 = vmax.f32 %v496, 0.0
  %v529 = vmax.f32 %v497, 0.0
  %v530 = vpack.c.bf16 %v499, %v498
  %v531 = vpack.c.bf16 %v501, %v500
  %v532 = vpack.c.bf16 %v503, %v502
  %v533 = vpack.c.bf16 %v505, %v504
  %v534 = vpack.c.bf16 %v507, %v506
  %v535 = vpack.c.bf16 %v509, %v508
  %v536 = vpack.c.bf16 %v511, %v510
  %v537 = vpack.c.bf16 %v513, %v512
  %v538 = vpack.c.bf16 %v515, %v514
  %v539 = vpack.c.bf16 %v517, %v516
  %v540 = vpack.c.bf16 %v519, %v518
  %v541 = vpack.c.bf16 %v521, %v520
  %v542 = vpack.c.bf16 %v523, %v522
  %v543 = vpack.c.bf16 %v525, %v524
  %v544 = vpack.c.bf16 %v527, %v526
  %v545 = vpack.c.bf16 %v529, %v528
  %v546 = vld [vmem:[%s3] sm:$0xf]
  %v547 = vld [vmem:[%s3 + $0x4] sm:$0xf]
  %v548 = vld [vmem:[%s3 + $0x8] sm:$0xf]
  %v549 = vld [vmem:[%s3 + $0xc] sm:$0xf]
  %v550 = vld [vmem:[%s3 + $0x10] sm:$0xf]
  %v551 = vld [vmem:[%s3 + $0x14] sm:$0xf]
  %v552 = vld [vmem:[%s3 + $0x18] sm:$0xf]
  %v553 = vld [vmem:[%s3 + $0x1c] sm:$0xf]
  %v554 = vld [vmem:[%s3 + $0x20] sm:$0xf]
  %v555 = vld [vmem:[%s3 + $0x24] sm:$0xf]
  %v556 = vld [vmem:[%s3 + $0x28] sm:$0xf]
  %v557 = vld [vmem:[%s3 + $0x2c] sm:$0xf]
  %v558 = vld [vmem:[%s3 + $0x30] sm:$0xf]
  %v559 = vld [vmem:[%s3 + $0x34] sm:$0xf]
  %v560 = vld [vmem:[%s3 + $0x38] sm:$0xf]
  %v561 = vld [vmem:[%s3 + $0x3c] sm:$0xf]
  %v562 = vld [vmem:[%s4] sm:$0x1]
  %v564 = vlaneseq
  %v565 = vshrl.u32 %v564, 7
  %v566 = vsub.s32 0, %v565
  %v567 = vrot.slane %v562, %v566
  %v585 = vunpack.c.l.b16 %v546
  %v586 = vunpack.c.l.b16 %v547
  %v587 = vunpack.c.l.b16 %v548
  %v588 = vunpack.c.l.b16 %v549
  %v589 = vunpack.c.l.b16 %v550
  %v590 = vunpack.c.l.b16 %v551
  %v591 = vunpack.c.l.b16 %v552
  %v592 = vunpack.c.l.b16 %v553
  %v593 = vunpack.c.l.b16 %v554
  %v594 = vunpack.c.l.b16 %v555
  %v595 = vunpack.c.l.b16 %v556
  %v596 = vunpack.c.l.b16 %v557
  %v597 = vunpack.c.l.b16 %v558
  %v598 = vunpack.c.l.b16 %v559
  %v599 = vunpack.c.l.b16 %v560
  %v600 = vunpack.c.l.b16 %v561
  %v601 = vpack.c.b16 %v586, %v585
  %v602 = vpack.c.b16 %v588, %v587
  %v603 = vpack.c.b16 %v590, %v589
  %v604 = vpack.c.b16 %v592, %v591
  %v605 = vpack.c.b16 %v594, %v593
  %v606 = vpack.c.b16 %v596, %v595
  %v607 = vpack.c.b16 %v598, %v597
  %v608 = vpack.c.b16 %v600, %v599
  %617 = vmatprep.subr.bf16.mxu0 0
  %618 = vmatpush1.bf16.msra.mxu0 %v608
  %619 = vmatprep.subr.bf16.mxu0 0
  %620 = vmatpush1.bf16.msra.mxu0 %v607
  %621 = vmatprep.subr.bf16.mxu0 0
  %622 = vmatpush1.bf16.msra.mxu0 %v606
  %623 = vmatprep.subr.bf16.mxu0 0
  %624 = vmatpush1.bf16.msra.mxu0 %v605
  %625 = vmatprep.subr.bf16.mxu0 0
  %626 = vmatpush1.bf16.msra.mxu0 %v604
  %627 = vmatprep.subr.bf16.mxu0 0
  %628 = vmatpush1.bf16.msra.mxu0 %v603
  %629 = vmatprep.subr.bf16.mxu0 0
  %630 = vmatpush1.bf16.msra.mxu0 %v602
  %631 = vmatprep.subr.bf16.mxu0 0
  %632 = vmatpush1.bf16.msra.mxu0 %v601
  %633 = vmatprep.subr.bf16.mxu0 0
  %634 = vmatpush2.bf16.msra.mxu0 0
  %635 = vmatprep.subr.bf16.mxu0 0
  %636 = vmatpush2.bf16.msra.mxu0 0
  %637 = vmatprep.subr.bf16.mxu0 0
  %638 = vmatpush2.bf16.msra.mxu0 0
  %639 = vmatprep.subr.bf16.mxu0 0
  %640 = vmatpush2.bf16.msra.mxu0 0
  %641 = vmatprep.subr.bf16.mxu0 0
  %642 = vmatpush2.bf16.msra.mxu0 0
  %643 = vmatprep.subr.bf16.mxu0 0
  %644 = vmatpush2.bf16.msra.mxu0 0
  %645 = vmatprep.subr.bf16.mxu0 0
  %646 = vmatpush2.bf16.msra.mxu0 0
  %647 = vmatprep.subr.bf16.mxu0 0
  %648 = vmatpush2.bf16.msra.mxu0 0
  %649 = vmatprep.mubr.bf16.mxu0 0
  %650 = vmatmul.mubr.bf16.gmra.mxu0 %v530
  %v651 = vpop.f32.mrf.mxu0
  %v652 = vadd.f32 %v567, %v651
  %v653 = vpop.f32.mrf.mxu0
  %v654 = vpop.f32.mrf.mxu0
  %v655 = vadd.f32 %v567, %v654
  %v656 = vpop.f32.mrf.mxu0
  %657 = vmatprep.mubr.bf16.mxu0 0
  %658 = vmatmul.mubr.bf16.gmra.mxu0 %v531
  %v659 = vpop.f32.mrf.mxu0
  %v660 = vadd.f32 %v567, %v659
  %v661 = vpop.f32.mrf.mxu0
  %v662 = vpop.f32.mrf.mxu0
  %v663 = vadd.f32 %v567, %v662
  %v664 = vpop.f32.mrf.mxu0
  %665 = vmatprep.mubr.bf16.mxu0 0
  %666 = vmatmul.mubr.bf16.gmra.mxu0 %v532
  %v667 = vpop.f32.mrf.mxu0
  %v668 = vadd.f32 %v567, %v667
  %v669 = vpop.f32.mrf.mxu0
  %v670 = vpop.f32.mrf.mxu0
  %v671 = vadd.f32 %v567, %v670
  %v672 = vpop.f32.mrf.mxu0
  %673 = vmatprep.mubr.bf16.mxu0 0
  %674 = vmatmul.mubr.bf16.gmra.mxu0 %v533
  %v675 = vpop.f32.mrf.mxu0
  %v676 = vadd.f32 %v567, %v675
  %v677 = vpop.f32.mrf.mxu0
  %v678 = vpop.f32.mrf.mxu0
  %v679 = vadd.f32 %v567, %v678
  %v680 = vpop.f32.mrf.mxu0
  %681 = vmatprep.mubr.bf16.mxu0 0
  %682 = vmatmul.mubr.bf16.gmra.mxu0 %v534
  %v683 = vpop.f32.mrf.mxu0
  %v684 = vadd.f32 %v567, %v683
  %v685 = vpop.f32.mrf.mxu0
  %v686 = vpop.f32.mrf.mxu0
  %v687 = vadd.f32 %v567, %v686
  %v688 = vpop.f32.mrf.mxu0
  %689 = vmatprep.mubr.bf16.mxu0 0
  %690 = vmatmul.mubr.bf16.gmra.mxu0 %v535
  %v691 = vpop.f32.mrf.mxu0
  %v692 = vadd.f32 %v567, %v691
  %v693 = vpop.f32.mrf.mxu0
  %v694 = vpop.f32.mrf.mxu0
  %v695 = vadd.f32 %v567, %v694
  %v696 = vpop.f32.mrf.mxu0
  %697 = vmatprep.mubr.bf16.mxu0 0
  %698 = vmatmul.mubr.bf16.gmra.mxu0 %v536
  %v699 = vpop.f32.mrf.mxu0
  %v700 = vadd.f32 %v567, %v699
  %v701 = vpop.f32.mrf.mxu0
  %v702 = vpop.f32.mrf.mxu0
  %v703 = vadd.f32 %v567, %v702
  %v704 = vpop.f32.mrf.mxu0
  %705 = vmatprep.mubr.bf16.mxu0 0
  %706 = vmatmul.mubr.bf16.gmra.mxu0 %v537
  %v707 = vpop.f32.mrf.mxu0
  %v708 = vadd.f32 %v567, %v707
  %v709 = vpop.f32.mrf.mxu0
  %v710 = vpop.f32.mrf.mxu0
  %v711 = vadd.f32 %v567, %v710
  %v712 = vpop.f32.mrf.mxu0
  %713 = vmatprep.mubr.bf16.mxu0 0
  %714 = vmatmul.mubr.bf16.gmra.mxu0 %v538
  %v715 = vpop.f32.mrf.mxu0
  %v716 = vadd.f32 %v567, %v715
  %v717 = vpop.f32.mrf.mxu0
  %v718 = vpop.f32.mrf.mxu0
  %v719 = vadd.f32 %v567, %v718
  %v720 = vpop.f32.mrf.mxu0
  %721 = vmatprep.mubr.bf16.mxu0 0
  %722 = vmatmul.mubr.bf16.gmra.mxu0 %v539
  %v723 = vpop.f32.mrf.mxu0
  %v724 = vadd.f32 %v567, %v723
  %v725 = vpop.f32.mrf.mxu0
  %v726 = vpop.f32.mrf.mxu0
  %v727 = vadd.f32 %v567, %v726
  %v728 = vpop.f32.mrf.mxu0
  %729 = vmatprep.mubr.bf16.mxu0 0
  %730 = vmatmul.mubr.bf16.gmra.mxu0 %v540
  %v731 = vpop.f32.mrf.mxu0
  %v732 = vadd.f32 %v567, %v731
  %v733 = vpop.f32.mrf.mxu0
  %v734 = vpop.f32.mrf.mxu0
  %v735 = vadd.f32 %v567, %v734
  %v736 = vpop.f32.mrf.mxu0
  %737 = vmatprep.mubr.bf16.mxu0 0
  %738 = vmatmul.mubr.bf16.gmra.mxu0 %v541
  %v739 = vpop.f32.mrf.mxu0
  %v740 = vadd.f32 %v567, %v739
  %v741 = vpop.f32.mrf.mxu0
  %v742 = vpop.f32.mrf.mxu0
  %v743 = vadd.f32 %v567, %v742
  %v744 = vpop.f32.mrf.mxu0
  %745 = vmatprep.mubr.bf16.mxu0 0
  %746 = vmatmul.mubr.bf16.gmra.mxu0 %v542
  %v747 = vpop.f32.mrf.mxu0
  %v748 = vadd.f32 %v567, %v747
  %v749 = vpop.f32.mrf.mxu0
  %v750 = vpop.f32.mrf.mxu0
  %v751 = vadd.f32 %v567, %v750
  %v752 = vpop.f32.mrf.mxu0
  %753 = vmatprep.mubr.bf16.mxu0 0
  %754 = vmatmul.mubr.bf16.gmra.mxu0 %v543
  %v755 = vpop.f32.mrf.mxu0
  %v756 = vadd.f32 %v567, %v755
  %v757 = vpop.f32.mrf.mxu0
  %v758 = vpop.f32.mrf.mxu0
  %v759 = vadd.f32 %v567, %v758
  %v760 = vpop.f32.mrf.mxu0
  %761 = vmatprep.mubr.bf16.mxu0 0
  %762 = vmatmul.mubr.bf16.gmra.mxu0 %v544
  %v763 = vpop.f32.mrf.mxu0
  %v764 = vadd.f32 %v567, %v763
  %v765 = vpop.f32.mrf.mxu0
  %v766 = vpop.f32.mrf.mxu0
  %v767 = vadd.f32 %v567, %v766
  %v768 = vpop.f32.mrf.mxu0
  %769 = vmatprep.mubr.bf16.mxu0 0
  %770 = vmatmul.mubr.bf16.gmra.mxu0 %v545
  %v771 = vpop.f32.mrf.mxu0
  %v772 = vadd.f32 %v567, %v771
  %v773 = vpop.f32.mrf.mxu0
  %v774 = vpop.f32.mrf.mxu0
  %v775 = vadd.f32 %v567, %v774
  %v776 = vpop.f32.mrf.mxu0
  %777 = vdwg.mxu0
  %v778 = vmax.f32 %v652, 0.0
  %v779 = vmax.f32 %v655, 0.0
  %v780 = vmax.f32 %v660, 0.0
  %v781 = vmax.f32 %v663, 0.0
  %v782 = vmax.f32 %v668, 0.0
  %v783 = vmax.f32 %v671, 0.0
  %v784 = vmax.f32 %v676, 0.0
  %v785 = vmax.f32 %v679, 0.0
  %v786 = vmax.f32 %v684, 0.0
  %v787 = vmax.f32 %v687, 0.0
  %v788 = vmax.f32 %v692, 0.0
  %v789 = vmax.f32 %v695, 0.0
  %v790 = vmax.f32 %v700, 0.0
  %v791 = vmax.f32 %v703, 0.0
  %v792 = vmax.f32 %v708, 0.0
  %v793 = vmax.f32 %v711, 0.0
  %v794 = vmax.f32 %v716, 0.0
  %v795 = vmax.f32 %v719, 0.0
  %v796 = vmax.f32 %v724, 0.0
  %v797 = vmax.f32 %v727, 0.0
  %v798 = vmax.f32 %v732, 0.0
  %v799 = vmax.f32 %v735, 0.0
  %v800 = vmax.f32 %v740, 0.0
  %v801 = vmax.f32 %v743, 0.0
  %v802 = vmax.f32 %v748, 0.0
  %v803 = vmax.f32 %v751, 0.0
  %v804 = vmax.f32 %v756, 0.0
  %v805 = vmax.f32 %v759, 0.0
  %v806 = vmax.f32 %v764, 0.0
  %v807 = vmax.f32 %v767, 0.0
  %v808 = vmax.f32 %v772, 0.0
  %v809 = vmax.f32 %v775, 0.0
  %v810 = vpack.c.bf16 %v779, %v778
  %v811 = vpack.c.bf16 %v781, %v780
  %v812 = vpack.c.bf16 %v783, %v782
  %v813 = vpack.c.bf16 %v785, %v784
  %v814 = vpack.c.bf16 %v787, %v786
  %v815 = vpack.c.bf16 %v789, %v788
  %v816 = vpack.c.bf16 %v791, %v790
  %v817 = vpack.c.bf16 %v793, %v792
  %v818 = vpack.c.bf16 %v795, %v794
  %v819 = vpack.c.bf16 %v797, %v796
  %v820 = vpack.c.bf16 %v799, %v798
  %v821 = vpack.c.bf16 %v801, %v800
  %v822 = vpack.c.bf16 %v803, %v802
  %v823 = vpack.c.bf16 %v805, %v804
  %v824 = vpack.c.bf16 %v807, %v806
  %v825 = vpack.c.bf16 %v809, %v808
  %v826 = vld [vmem:[%s5] sm:$0xf]
  %v827 = vld [vmem:[%s5 + $0x4] sm:$0xf]
  %v828 = vld [vmem:[%s5 + $0x8] sm:$0xf]
  %v829 = vld [vmem:[%s5 + $0xc] sm:$0xf]
  %v830 = vld [vmem:[%s5 + $0x10] sm:$0xf]
  %v831 = vld [vmem:[%s5 + $0x14] sm:$0xf]
  %v832 = vld [vmem:[%s5 + $0x18] sm:$0xf]
  %v833 = vld [vmem:[%s5 + $0x1c] sm:$0xf]
  %v834 = vld [vmem:[%s5 + $0x20] sm:$0xf]
  %v835 = vld [vmem:[%s5 + $0x24] sm:$0xf]
  %v836 = vld [vmem:[%s5 + $0x28] sm:$0xf]
  %v837 = vld [vmem:[%s5 + $0x2c] sm:$0xf]
  %v838 = vld [vmem:[%s5 + $0x30] sm:$0xf]
  %v839 = vld [vmem:[%s5 + $0x34] sm:$0xf]
  %v840 = vld [vmem:[%s5 + $0x38] sm:$0xf]
  %v841 = vld [vmem:[%s5 + $0x3c] sm:$0xf]
  %v842 = vld [vmem:[%s6] sm:$0x1]
  %v844 = vlaneseq
  %v845 = vshrl.u32 %v844, 7
  %v846 = vsub.s32 0, %v845
  %v847 = vrot.slane %v842, %v846
  %v865 = vunpack.c.l.b16 %v826
  %v866 = vunpack.c.l.b16 %v827
  %v867 = vunpack.c.l.b16 %v828
  %v868 = vunpack.c.l.b16 %v829
  %v869 = vunpack.c.l.b16 %v830
  %v870 = vunpack.c.l.b16 %v831
  %v871 = vunpack.c.l.b16 %v832
  %v872 = vunpack.c.l.b16 %v833
  %v873 = vunpack.c.l.b16 %v834
  %v874 = vunpack.c.l.b16 %v835
  %v875 = vunpack.c.l.b16 %v836
  %v876 = vunpack.c.l.b16 %v837
  %v877 = vunpack.c.l.b16 %v838
  %v878 = vunpack.c.l.b16 %v839
  %v879 = vunpack.c.l.b16 %v840
  %v880 = vunpack.c.l.b16 %v841
  %v881 = vpack.c.b16 %v866, %v865
  %v882 = vpack.c.b16 %v868, %v867
  %v883 = vpack.c.b16 %v870, %v869
  %v884 = vpack.c.b16 %v872, %v871
  %v885 = vpack.c.b16 %v874, %v873
  %v886 = vpack.c.b16 %v876, %v875
  %v887 = vpack.c.b16 %v878, %v877
  %v888 = vpack.c.b16 %v880, %v879
  %897 = vmatprep.subr.bf16.mxu0 0
  %898 = vmatpush1.bf16.msra.mxu0 %v888
  %899 = vmatprep.subr.bf16.mxu0 0
  %900 = vmatpush1.bf16.msra.mxu0 %v887
  %901 = vmatprep.subr.bf16.mxu0 0
  %902 = vmatpush1.bf16.msra.mxu0 %v886
  %903 = vmatprep.subr.bf16.mxu0 0
  %904 = vmatpush1.bf16.msra.mxu0 %v885
  %905 = vmatprep.subr.bf16.mxu0 0
  %906 = vmatpush1.bf16.msra.mxu0 %v884
  %907 = vmatprep.subr.bf16.mxu0 0
  %908 = vmatpush1.bf16.msra.mxu0 %v883
  %909 = vmatprep.subr.bf16.mxu0 0
  %910 = vmatpush1.bf16.msra.mxu0 %v882
  %911 = vmatprep.subr.bf16.mxu0 0
  %912 = vmatpush1.bf16.msra.mxu0 %v881
  %913 = vmatprep.subr.bf16.mxu0 0
  %914 = vmatpush2.bf16.msra.mxu0 0
  %915 = vmatprep.subr.bf16.mxu0 0
  %916 = vmatpush2.bf16.msra.mxu0 0
  %917 = vmatprep.subr.bf16.mxu0 0
  %918 = vmatpush2.bf16.msra.mxu0 0
  %919 = vmatprep.subr.bf16.mxu0 0
  %920 = vmatpush2.bf16.msra.mxu0 0
  %921 = vmatprep.subr.bf16.mxu0 0
  %922 = vmatpush2.bf16.msra.mxu0 0
  %923 = vmatprep.subr.bf16.mxu0 0
  %924 = vmatpush2.bf16.msra.mxu0 0
  %925 = vmatprep.subr.bf16.mxu0 0
  %926 = vmatpush2.bf16.msra.mxu0 0
  %927 = vmatprep.subr.bf16.mxu0 0
  %928 = vmatpush2.bf16.msra.mxu0 0
  %929 = vmatprep.mubr.bf16.mxu0 0
  %930 = vmatmul.mubr.bf16.gmra.mxu0 %v810
  %v931 = vpop.f32.mrf.mxu0
  %v932 = vadd.f32 %v847, %v931
  %v933 = vpop.f32.mrf.mxu0
  %v934 = vpop.f32.mrf.mxu0
  %v935 = vadd.f32 %v847, %v934
  %v936 = vpop.f32.mrf.mxu0
  %937 = vmatprep.mubr.bf16.mxu0 0
  %938 = vmatmul.mubr.bf16.gmra.mxu0 %v811
  %v939 = vpop.f32.mrf.mxu0
  %v940 = vadd.f32 %v847, %v939
  %v941 = vpop.f32.mrf.mxu0
  %v942 = vpop.f32.mrf.mxu0
  %v943 = vadd.f32 %v847, %v942
  %v944 = vpop.f32.mrf.mxu0
  %945 = vmatprep.mubr.bf16.mxu0 0
  %946 = vmatmul.mubr.bf16.gmra.mxu0 %v812
  %v947 = vpop.f32.mrf.mxu0
  %v948 = vadd.f32 %v847, %v947
  %v949 = vpop.f32.mrf.mxu0
  %v950 = vpop.f32.mrf.mxu0
  %v951 = vadd.f32 %v847, %v950
  %v952 = vpop.f32.mrf.mxu0
  %953 = vmatprep.mubr.bf16.mxu0 0
  %954 = vmatmul.mubr.bf16.gmra.mxu0 %v813
  %v955 = vpop.f32.mrf.mxu0
  %v956 = vadd.f32 %v847, %v955
  %v957 = vpop.f32.mrf.mxu0
  %v958 = vpop.f32.mrf.mxu0
  %v959 = vadd.f32 %v847, %v958
  %v960 = vpop.f32.mrf.mxu0
  %961 = vmatprep.mubr.bf16.mxu0 0
  %962 = vmatmul.mubr.bf16.gmra.mxu0 %v814
  %v963 = vpop.f32.mrf.mxu0
  %v964 = vadd.f32 %v847, %v963
  %v965 = vpop.f32.mrf.mxu0
  %v966 = vpop.f32.mrf.mxu0
  %v967 = vadd.f32 %v847, %v966
  %v968 = vpop.f32.mrf.mxu0
  %969 = vmatprep.mubr.bf16.mxu0 0
  %970 = vmatmul.mubr.bf16.gmra.mxu0 %v815
  %v971 = vpop.f32.mrf.mxu0
  %v972 = vadd.f32 %v847, %v971
  %v973 = vpop.f32.mrf.mxu0
  %v974 = vpop.f32.mrf.mxu0
  %v975 = vadd.f32 %v847, %v974
  %v976 = vpop.f32.mrf.mxu0
  %977 = vmatprep.mubr.bf16.mxu0 0
  %978 = vmatmul.mubr.bf16.gmra.mxu0 %v816
  %v979 = vpop.f32.mrf.mxu0
  %v980 = vadd.f32 %v847, %v979
  %v981 = vpop.f32.mrf.mxu0
  %v982 = vpop.f32.mrf.mxu0
  %v983 = vadd.f32 %v847, %v982
  %v984 = vpop.f32.mrf.mxu0
  %985 = vmatprep.mubr.bf16.mxu0 0
  %986 = vmatmul.mubr.bf16.gmra.mxu0 %v817
  %v987 = vpop.f32.mrf.mxu0
  %v988 = vadd.f32 %v847, %v987
  %v989 = vpop.f32.mrf.mxu0
  %v990 = vpop.f32.mrf.mxu0
  %v991 = vadd.f32 %v847, %v990
  %v992 = vpop.f32.mrf.mxu0
  %993 = vmatprep.mubr.bf16.mxu0 0
  %994 = vmatmul.mubr.bf16.gmra.mxu0 %v818
  %v995 = vpop.f32.mrf.mxu0
  %v996 = vadd.f32 %v847, %v995
  %v997 = vpop.f32.mrf.mxu0
  %v998 = vpop.f32.mrf.mxu0
  %v999 = vadd.f32 %v847, %v998
  %v1000 = vpop.f32.mrf.mxu0
  %1001 = vmatprep.mubr.bf16.mxu0 0
  %1002 = vmatmul.mubr.bf16.gmra.mxu0 %v819
  %v1003 = vpop.f32.mrf.mxu0
  %v1004 = vadd.f32 %v847, %v1003
  %v1005 = vpop.f32.mrf.mxu0
  %v1006 = vpop.f32.mrf.mxu0
  %v1007 = vadd.f32 %v847, %v1006
  %v1008 = vpop.f32.mrf.mxu0
  %1009 = vmatprep.mubr.bf16.mxu0 0
  %1010 = vmatmul.mubr.bf16.gmra.mxu0 %v820
  %v1011 = vpop.f32.mrf.mxu0
  %v1012 = vadd.f32 %v847, %v1011
  %v1013 = vpop.f32.mrf.mxu0
  %v1014 = vpop.f32.mrf.mxu0
  %v1015 = vadd.f32 %v847, %v1014
  %v1016 = vpop.f32.mrf.mxu0
  %1017 = vmatprep.mubr.bf16.mxu0 0
  %1018 = vmatmul.mubr.bf16.gmra.mxu0 %v821
  %v1019 = vpop.f32.mrf.mxu0
  %v1020 = vadd.f32 %v847, %v1019
  %v1021 = vpop.f32.mrf.mxu0
  %v1022 = vpop.f32.mrf.mxu0
  %v1023 = vadd.f32 %v847, %v1022
  %v1024 = vpop.f32.mrf.mxu0
  %1025 = vmatprep.mubr.bf16.mxu0 0
  %1026 = vmatmul.mubr.bf16.gmra.mxu0 %v822
  %v1027 = vpop.f32.mrf.mxu0
  %v1028 = vadd.f32 %v847, %v1027
  %v1029 = vpop.f32.mrf.mxu0
  %v1030 = vpop.f32.mrf.mxu0
  %v1031 = vadd.f32 %v847, %v1030
  %v1032 = vpop.f32.mrf.mxu0
  %1033 = vmatprep.mubr.bf16.mxu0 0
  %1034 = vmatmul.mubr.bf16.gmra.mxu0 %v823
  %v1035 = vpop.f32.mrf.mxu0
  %v1036 = vadd.f32 %v847, %v1035
  %v1037 = vpop.f32.mrf.mxu0
  %v1038 = vpop.f32.mrf.mxu0
  %v1039 = vadd.f32 %v847, %v1038
  %v1040 = vpop.f32.mrf.mxu0
  %1041 = vmatprep.mubr.bf16.mxu0 0
  %1042 = vmatmul.mubr.bf16.gmra.mxu0 %v824
  %v1043 = vpop.f32.mrf.mxu0
  %v1044 = vadd.f32 %v847, %v1043
  %v1045 = vpop.f32.mrf.mxu0
  %v1046 = vpop.f32.mrf.mxu0
  %v1047 = vadd.f32 %v847, %v1046
  %v1048 = vpop.f32.mrf.mxu0
  %1049 = vmatprep.mubr.bf16.mxu0 0
  %1050 = vmatmul.mubr.bf16.gmra.mxu0 %v825
  %v1051 = vpop.f32.mrf.mxu0
  %v1052 = vadd.f32 %v847, %v1051
  %v1053 = vpop.f32.mrf.mxu0
  %v1054 = vpop.f32.mrf.mxu0
  %v1055 = vadd.f32 %v847, %v1054
  %v1056 = vpop.f32.mrf.mxu0
  %1057 = vdwg.mxu0
  %v1058 = vmax.f32 %v932, 0.0
  %v1059 = vmax.f32 %v935, 0.0
  %v1060 = vmax.f32 %v940, 0.0
  %v1061 = vmax.f32 %v943, 0.0
  %v1062 = vmax.f32 %v948, 0.0
  %v1063 = vmax.f32 %v951, 0.0
  %v1064 = vmax.f32 %v956, 0.0
  %v1065 = vmax.f32 %v959, 0.0
  %v1066 = vmax.f32 %v964, 0.0
  %v1067 = vmax.f32 %v967, 0.0
  %v1068 = vmax.f32 %v972, 0.0
  %v1069 = vmax.f32 %v975, 0.0
  %v1070 = vmax.f32 %v980, 0.0
  %v1071 = vmax.f32 %v983, 0.0
  %v1072 = vmax.f32 %v988, 0.0
  %v1073 = vmax.f32 %v991, 0.0
  %v1074 = vmax.f32 %v996, 0.0
  %v1075 = vmax.f32 %v999, 0.0
  %v1076 = vmax.f32 %v1004, 0.0
  %v1077 = vmax.f32 %v1007, 0.0
  %v1078 = vmax.f32 %v1012, 0.0
  %v1079 = vmax.f32 %v1015, 0.0
  %v1080 = vmax.f32 %v1020, 0.0
  %v1081 = vmax.f32 %v1023, 0.0
  %v1082 = vmax.f32 %v1028, 0.0
  %v1083 = vmax.f32 %v1031, 0.0
  %v1084 = vmax.f32 %v1036, 0.0
  %v1085 = vmax.f32 %v1039, 0.0
  %v1086 = vmax.f32 %v1044, 0.0
  %v1087 = vmax.f32 %v1047, 0.0
  %v1088 = vmax.f32 %v1052, 0.0
  %v1089 = vmax.f32 %v1055, 0.0
  %v1090 = vpack.c.bf16 %v1059, %v1058
  %v1091 = vpack.c.bf16 %v1061, %v1060
  %v1092 = vpack.c.bf16 %v1063, %v1062
  %v1093 = vpack.c.bf16 %v1065, %v1064
  %v1094 = vpack.c.bf16 %v1067, %v1066
  %v1095 = vpack.c.bf16 %v1069, %v1068
  %v1096 = vpack.c.bf16 %v1071, %v1070
  %v1097 = vpack.c.bf16 %v1073, %v1072
  %v1098 = vpack.c.bf16 %v1075, %v1074
  %v1099 = vpack.c.bf16 %v1077, %v1076
  %v1100 = vpack.c.bf16 %v1079, %v1078
  %v1101 = vpack.c.bf16 %v1081, %v1080
  %v1102 = vpack.c.bf16 %v1083, %v1082
  %v1103 = vpack.c.bf16 %v1085, %v1084
  %v1104 = vpack.c.bf16 %v1087, %v1086
  %v1105 = vpack.c.bf16 %v1089, %v1088
  %v1106 = vld [vmem:[%s7] sm:$0xf]
  %v1107 = vld [vmem:[%s7 + $0x4] sm:$0xf]
  %v1108 = vld [vmem:[%s7 + $0x8] sm:$0xf]
  %v1109 = vld [vmem:[%s7 + $0xc] sm:$0xf]
  %v1110 = vld [vmem:[%s7 + $0x10] sm:$0xf]
  %v1111 = vld [vmem:[%s7 + $0x14] sm:$0xf]
  %v1112 = vld [vmem:[%s7 + $0x18] sm:$0xf]
  %v1113 = vld [vmem:[%s7 + $0x1c] sm:$0xf]
  %v1114 = vld [vmem:[%s7 + $0x20] sm:$0xf]
  %v1115 = vld [vmem:[%s7 + $0x24] sm:$0xf]
  %v1116 = vld [vmem:[%s7 + $0x28] sm:$0xf]
  %v1117 = vld [vmem:[%s7 + $0x2c] sm:$0xf]
  %v1118 = vld [vmem:[%s7 + $0x30] sm:$0xf]
  %v1119 = vld [vmem:[%s7 + $0x34] sm:$0xf]
  %v1120 = vld [vmem:[%s7 + $0x38] sm:$0xf]
  %v1121 = vld [vmem:[%s7 + $0x3c] sm:$0xf]
  %v1122 = vld [vmem:[%s8] sm:$0x1]
  %v1124 = vlaneseq
  %v1125 = vshrl.u32 %v1124, 7
  %v1126 = vsub.s32 0, %v1125
  %v1127 = vrot.slane %v1122, %v1126
  %v1145 = vunpack.c.l.b16 %v1106
  %v1146 = vunpack.c.l.b16 %v1107
  %v1147 = vunpack.c.l.b16 %v1108
  %v1148 = vunpack.c.l.b16 %v1109
  %v1149 = vunpack.c.l.b16 %v1110
  %v1150 = vunpack.c.l.b16 %v1111
  %v1151 = vunpack.c.l.b16 %v1112
  %v1152 = vunpack.c.l.b16 %v1113
  %v1153 = vunpack.c.l.b16 %v1114
  %v1154 = vunpack.c.l.b16 %v1115
  %v1155 = vunpack.c.l.b16 %v1116
  %v1156 = vunpack.c.l.b16 %v1117
  %v1157 = vunpack.c.l.b16 %v1118
  %v1158 = vunpack.c.l.b16 %v1119
  %v1159 = vunpack.c.l.b16 %v1120
  %v1160 = vunpack.c.l.b16 %v1121
  %v1161 = vpack.c.b16 %v1146, %v1145
  %v1162 = vpack.c.b16 %v1148, %v1147
  %v1163 = vpack.c.b16 %v1150, %v1149
  %v1164 = vpack.c.b16 %v1152, %v1151
  %v1165 = vpack.c.b16 %v1154, %v1153
  %v1166 = vpack.c.b16 %v1156, %v1155
  %v1167 = vpack.c.b16 %v1158, %v1157
  %v1168 = vpack.c.b16 %v1160, %v1159
  %1177 = vmatprep.subr.bf16.mxu0 0
  %1178 = vmatpush1.bf16.msra.mxu0 %v1168
  %1179 = vmatprep.subr.bf16.mxu0 0
  %1180 = vmatpush1.bf16.msra.mxu0 %v1167
  %1181 = vmatprep.subr.bf16.mxu0 0
  %1182 = vmatpush1.bf16.msra.mxu0 %v1166
  %1183 = vmatprep.subr.bf16.mxu0 0
  %1184 = vmatpush1.bf16.msra.mxu0 %v1165
  %1185 = vmatprep.subr.bf16.mxu0 0
  %1186 = vmatpush1.bf16.msra.mxu0 %v1164
  %1187 = vmatprep.subr.bf16.mxu0 0
  %1188 = vmatpush1.bf16.msra.mxu0 %v1163
  %1189 = vmatprep.subr.bf16.mxu0 0
  %1190 = vmatpush1.bf16.msra.mxu0 %v1162
  %1191 = vmatprep.subr.bf16.mxu0 0
  %1192 = vmatpush1.bf16.msra.mxu0 %v1161
  %1193 = vmatprep.subr.bf16.mxu0 0
  %1194 = vmatpush2.bf16.msra.mxu0 0
  %1195 = vmatprep.subr.bf16.mxu0 0
  %1196 = vmatpush2.bf16.msra.mxu0 0
  %1197 = vmatprep.subr.bf16.mxu0 0
  %1198 = vmatpush2.bf16.msra.mxu0 0
  %1199 = vmatprep.subr.bf16.mxu0 0
  %1200 = vmatpush2.bf16.msra.mxu0 0
  %1201 = vmatprep.subr.bf16.mxu0 0
  %1202 = vmatpush2.bf16.msra.mxu0 0
  %1203 = vmatprep.subr.bf16.mxu0 0
  %1204 = vmatpush2.bf16.msra.mxu0 0
  %1205 = vmatprep.subr.bf16.mxu0 0
  %1206 = vmatpush2.bf16.msra.mxu0 0
  %1207 = vmatprep.subr.bf16.mxu0 0
  %1208 = vmatpush2.bf16.msra.mxu0 0
  %1209 = vmatprep.mubr.bf16.mxu0 0
  %1210 = vmatmul.mubr.bf16.gmra.mxu0 %v1090
  %v1211 = vpop.f32.mrf.mxu0
  %v1212 = vadd.f32 %v1127, %v1211
  %v1213 = vpop.f32.mrf.mxu0
  %v1214 = vpop.f32.mrf.mxu0
  %v1215 = vadd.f32 %v1127, %v1214
  %v1216 = vpop.f32.mrf.mxu0
  %1217 = vmatprep.mubr.bf16.mxu0 0
  %1218 = vmatmul.mubr.bf16.gmra.mxu0 %v1091
  %v1219 = vpop.f32.mrf.mxu0
  %v1220 = vadd.f32 %v1127, %v1219
  %v1221 = vpop.f32.mrf.mxu0
  %v1222 = vpop.f32.mrf.mxu0
  %v1223 = vadd.f32 %v1127, %v1222
  %v1224 = vpop.f32.mrf.mxu0
  %1225 = vmatprep.mubr.bf16.mxu0 0
  %1226 = vmatmul.mubr.bf16.gmra.mxu0 %v1092
  %v1227 = vpop.f32.mrf.mxu0
  %v1228 = vadd.f32 %v1127, %v1227
  %v1229 = vpop.f32.mrf.mxu0
  %v1230 = vpop.f32.mrf.mxu0
  %v1231 = vadd.f32 %v1127, %v1230
  %v1232 = vpop.f32.mrf.mxu0
  %1233 = vmatprep.mubr.bf16.mxu0 0
  %1234 = vmatmul.mubr.bf16.gmra.mxu0 %v1093
  %v1235 = vpop.f32.mrf.mxu0
  %v1236 = vadd.f32 %v1127, %v1235
  %v1237 = vpop.f32.mrf.mxu0
  %v1238 = vpop.f32.mrf.mxu0
  %v1239 = vadd.f32 %v1127, %v1238
  %v1240 = vpop.f32.mrf.mxu0
  %1241 = vmatprep.mubr.bf16.mxu0 0
  %1242 = vmatmul.mubr.bf16.gmra.mxu0 %v1094
  %v1243 = vpop.f32.mrf.mxu0
  %v1244 = vadd.f32 %v1127, %v1243
  %v1245 = vpop.f32.mrf.mxu0
  %v1246 = vpop.f32.mrf.mxu0
  %v1247 = vadd.f32 %v1127, %v1246
  %v1248 = vpop.f32.mrf.mxu0
  %1249 = vmatprep.mubr.bf16.mxu0 0
  %1250 = vmatmul.mubr.bf16.gmra.mxu0 %v1095
  %v1251 = vpop.f32.mrf.mxu0
  %v1252 = vadd.f32 %v1127, %v1251
  %v1253 = vpop.f32.mrf.mxu0
  %v1254 = vpop.f32.mrf.mxu0
  %v1255 = vadd.f32 %v1127, %v1254
  %v1256 = vpop.f32.mrf.mxu0
  %1257 = vmatprep.mubr.bf16.mxu0 0
  %1258 = vmatmul.mubr.bf16.gmra.mxu0 %v1096
  %v1259 = vpop.f32.mrf.mxu0
  %v1260 = vadd.f32 %v1127, %v1259
  %v1261 = vpop.f32.mrf.mxu0
  %v1262 = vpop.f32.mrf.mxu0
  %v1263 = vadd.f32 %v1127, %v1262
  %v1264 = vpop.f32.mrf.mxu0
  %1265 = vmatprep.mubr.bf16.mxu0 0
  %1266 = vmatmul.mubr.bf16.gmra.mxu0 %v1097
  %v1267 = vpop.f32.mrf.mxu0
  %v1268 = vadd.f32 %v1127, %v1267
  %v1269 = vpop.f32.mrf.mxu0
  %v1270 = vpop.f32.mrf.mxu0
  %v1271 = vadd.f32 %v1127, %v1270
  %v1272 = vpop.f32.mrf.mxu0
  %1273 = vmatprep.mubr.bf16.mxu0 0
  %1274 = vmatmul.mubr.bf16.gmra.mxu0 %v1098
  %v1275 = vpop.f32.mrf.mxu0
  %v1276 = vadd.f32 %v1127, %v1275
  %v1277 = vpop.f32.mrf.mxu0
  %v1278 = vpop.f32.mrf.mxu0
  %v1279 = vadd.f32 %v1127, %v1278
  %v1280 = vpop.f32.mrf.mxu0
  %1281 = vmatprep.mubr.bf16.mxu0 0
  %1282 = vmatmul.mubr.bf16.gmra.mxu0 %v1099
  %v1283 = vpop.f32.mrf.mxu0
  %v1284 = vadd.f32 %v1127, %v1283
  %v1285 = vpop.f32.mrf.mxu0
  %v1286 = vpop.f32.mrf.mxu0
  %v1287 = vadd.f32 %v1127, %v1286
  %v1288 = vpop.f32.mrf.mxu0
  %1289 = vmatprep.mubr.bf16.mxu0 0
  %1290 = vmatmul.mubr.bf16.gmra.mxu0 %v1100
  %v1291 = vpop.f32.mrf.mxu0
  %v1292 = vadd.f32 %v1127, %v1291
  %v1293 = vpop.f32.mrf.mxu0
  %v1294 = vpop.f32.mrf.mxu0
  %v1295 = vadd.f32 %v1127, %v1294
  %v1296 = vpop.f32.mrf.mxu0
  %1297 = vmatprep.mubr.bf16.mxu0 0
  %1298 = vmatmul.mubr.bf16.gmra.mxu0 %v1101
  %v1299 = vpop.f32.mrf.mxu0
  %v1300 = vadd.f32 %v1127, %v1299
  %v1301 = vpop.f32.mrf.mxu0
  %v1302 = vpop.f32.mrf.mxu0
  %v1303 = vadd.f32 %v1127, %v1302
  %v1304 = vpop.f32.mrf.mxu0
  %1305 = vmatprep.mubr.bf16.mxu0 0
  %1306 = vmatmul.mubr.bf16.gmra.mxu0 %v1102
  %v1307 = vpop.f32.mrf.mxu0
  %v1308 = vadd.f32 %v1127, %v1307
  %v1309 = vpop.f32.mrf.mxu0
  %v1310 = vpop.f32.mrf.mxu0
  %v1311 = vadd.f32 %v1127, %v1310
  %v1312 = vpop.f32.mrf.mxu0
  %1313 = vmatprep.mubr.bf16.mxu0 0
  %1314 = vmatmul.mubr.bf16.gmra.mxu0 %v1103
  %v1315 = vpop.f32.mrf.mxu0
  %v1316 = vadd.f32 %v1127, %v1315
  %v1317 = vpop.f32.mrf.mxu0
  %v1318 = vpop.f32.mrf.mxu0
  %v1319 = vadd.f32 %v1127, %v1318
  %v1320 = vpop.f32.mrf.mxu0
  %1321 = vmatprep.mubr.bf16.mxu0 0
  %1322 = vmatmul.mubr.bf16.gmra.mxu0 %v1104
  %v1323 = vpop.f32.mrf.mxu0
  %v1324 = vadd.f32 %v1127, %v1323
  %v1325 = vpop.f32.mrf.mxu0
  %v1326 = vpop.f32.mrf.mxu0
  %v1327 = vadd.f32 %v1127, %v1326
  %v1328 = vpop.f32.mrf.mxu0
  %1329 = vmatprep.mubr.bf16.mxu0 0
  %1330 = vmatmul.mubr.bf16.gmra.mxu0 %v1105
  %v1331 = vpop.f32.mrf.mxu0
  %v1332 = vadd.f32 %v1127, %v1331
  %v1333 = vpop.f32.mrf.mxu0
  %v1334 = vpop.f32.mrf.mxu0
  %v1335 = vadd.f32 %v1127, %v1334
  %v1336 = vpop.f32.mrf.mxu0
  %1337 = vdwg.mxu0
  %v1338 = vmax.f32 %v1212, -30.0
  %v1339 = vmax.f32 %v1215, -30.0
  %v1340 = vmax.f32 %v1220, -30.0
  %v1341 = vmax.f32 %v1223, -30.0
  %v1342 = vmax.f32 %v1228, -30.0
  %v1343 = vmax.f32 %v1231, -30.0
  %v1344 = vmax.f32 %v1236, -30.0
  %v1345 = vmax.f32 %v1239, -30.0
  %v1346 = vmax.f32 %v1244, -30.0
  %v1347 = vmax.f32 %v1247, -30.0
  %v1348 = vmax.f32 %v1252, -30.0
  %v1349 = vmax.f32 %v1255, -30.0
  %v1350 = vmax.f32 %v1260, -30.0
  %v1351 = vmax.f32 %v1263, -30.0
  %v1352 = vmax.f32 %v1268, -30.0
  %v1353 = vmax.f32 %v1271, -30.0
  %v1354 = vmax.f32 %v1276, -30.0
  %v1355 = vmax.f32 %v1279, -30.0
  %v1356 = vmax.f32 %v1284, -30.0
  %v1357 = vmax.f32 %v1287, -30.0
  %v1358 = vmax.f32 %v1292, -30.0
  %v1359 = vmax.f32 %v1295, -30.0
  %v1360 = vmax.f32 %v1300, -30.0
  %v1361 = vmax.f32 %v1303, -30.0
  %v1362 = vmax.f32 %v1308, -30.0
  %v1363 = vmax.f32 %v1311, -30.0
  %v1364 = vmax.f32 %v1316, -30.0
  %v1365 = vmax.f32 %v1319, -30.0
  %v1366 = vmax.f32 %v1324, -30.0
  %v1367 = vmax.f32 %v1327, -30.0
  %v1368 = vmax.f32 %v1332, -30.0
  %v1369 = vmax.f32 %v1335, -30.0
  %v1370 = vmin.f32 %v1338, 30.0
  %v1371 = vmin.f32 %v1339, 30.0
  %v1372 = vmin.f32 %v1340, 30.0
  %v1373 = vmin.f32 %v1341, 30.0
  %v1374 = vmin.f32 %v1342, 30.0
  %v1375 = vmin.f32 %v1343, 30.0
  %v1376 = vmin.f32 %v1344, 30.0
  %v1377 = vmin.f32 %v1345, 30.0
  %v1378 = vmin.f32 %v1346, 30.0
  %v1379 = vmin.f32 %v1347, 30.0
  %v1380 = vmin.f32 %v1348, 30.0
  %v1381 = vmin.f32 %v1349, 30.0
  %v1382 = vmin.f32 %v1350, 30.0
  %v1383 = vmin.f32 %v1351, 30.0
  %v1384 = vmin.f32 %v1352, 30.0
  %v1385 = vmin.f32 %v1353, 30.0
  %v1386 = vmin.f32 %v1354, 30.0
  %v1387 = vmin.f32 %v1355, 30.0
  %v1388 = vmin.f32 %v1356, 30.0
  %v1389 = vmin.f32 %v1357, 30.0
  %v1390 = vmin.f32 %v1358, 30.0
  %v1391 = vmin.f32 %v1359, 30.0
  %v1392 = vmin.f32 %v1360, 30.0
  %v1393 = vmin.f32 %v1361, 30.0
  %v1394 = vmin.f32 %v1362, 30.0
  %v1395 = vmin.f32 %v1363, 30.0
  %v1396 = vmin.f32 %v1364, 30.0
  %v1397 = vmin.f32 %v1365, 30.0
  %v1398 = vmin.f32 %v1366, 30.0
  %v1399 = vmin.f32 %v1367, 30.0
  %v1400 = vmin.f32 %v1368, 30.0
  %v1401 = vmin.f32 %v1369, 30.0
  %v1402 = vsub.f32 0.0, %v1370
  %v1403 = vsub.f32 0.0, %v1371
  %v1404 = vsub.f32 0.0, %v1372
  %v1405 = vsub.f32 0.0, %v1373
  %v1406 = vsub.f32 0.0, %v1374
  %v1407 = vsub.f32 0.0, %v1375
  %v1408 = vsub.f32 0.0, %v1376
  %v1409 = vsub.f32 0.0, %v1377
  %v1410 = vsub.f32 0.0, %v1378
  %v1411 = vsub.f32 0.0, %v1379
  %v1412 = vsub.f32 0.0, %v1380
  %v1413 = vsub.f32 0.0, %v1381
  %v1414 = vsub.f32 0.0, %v1382
  %v1415 = vsub.f32 0.0, %v1383
  %v1416 = vsub.f32 0.0, %v1384
  %v1417 = vsub.f32 0.0, %v1385
  %v1418 = vsub.f32 0.0, %v1386
  %v1419 = vsub.f32 0.0, %v1387
  %v1420 = vsub.f32 0.0, %v1388
  %v1421 = vsub.f32 0.0, %v1389
  %v1422 = vsub.f32 0.0, %v1390
  %v1423 = vsub.f32 0.0, %v1391
  %v1424 = vsub.f32 0.0, %v1392
  %v1425 = vsub.f32 0.0, %v1393
  %v1426 = vsub.f32 0.0, %v1394
  %v1427 = vsub.f32 0.0, %v1395
  %v1428 = vsub.f32 0.0, %v1396
  %v1429 = vsub.f32 0.0, %v1397
  %v1430 = vsub.f32 0.0, %v1398
  %v1431 = vsub.f32 0.0, %v1399
  %v1432 = vsub.f32 0.0, %v1400
  %v1433 = vsub.f32 0.0, %v1401
  %v1434 = vmul.f32 %v1402, 1.442695
  %v1435 = vpow.pop %v1434
  %v1436 = vmul.f32 %v1403, 1.442695
  %v1437 = vpow.pop %v1436
  %v1438 = vmul.f32 %v1404, 1.442695
  %v1439 = vpow.pop %v1438
  %v1440 = vmul.f32 %v1405, 1.442695
  %v1441 = vpow.pop %v1440
  %v1442 = vmul.f32 %v1406, 1.442695
  %v1443 = vpow.pop %v1442
  %v1444 = vmul.f32 %v1407, 1.442695
  %v1445 = vpow.pop %v1444
  %v1446 = vmul.f32 %v1408, 1.442695
  %v1447 = vpow.pop %v1446
  %v1448 = vmul.f32 %v1409, 1.442695
  %v1449 = vpow.pop %v1448
  %v1450 = vmul.f32 %v1410, 1.442695
  %v1451 = vpow.pop %v1450
  %v1452 = vmul.f32 %v1411, 1.442695
  %v1453 = vpow.pop %v1452
  %v1454 = vmul.f32 %v1412, 1.442695
  %v1455 = vpow.pop %v1454
  %v1456 = vmul.f32 %v1413, 1.442695
  %v1457 = vpow.pop %v1456
  %v1458 = vmul.f32 %v1414, 1.442695
  %v1459 = vpow.pop %v1458
  %v1460 = vmul.f32 %v1415, 1.442695
  %v1461 = vpow.pop %v1460
  %v1462 = vmul.f32 %v1416, 1.442695
  %v1463 = vpow.pop %v1462
  %v1464 = vmul.f32 %v1417, 1.442695
  %v1465 = vpow.pop %v1464
  %v1466 = vmul.f32 %v1418, 1.442695
  %v1467 = vpow.pop %v1466
  %v1468 = vmul.f32 %v1419, 1.442695
  %v1469 = vpow.pop %v1468
  %v1470 = vmul.f32 %v1420, 1.442695
  %v1471 = vpow.pop %v1470
  %v1472 = vmul.f32 %v1421, 1.442695
  %v1473 = vpow.pop %v1472
  %v1474 = vmul.f32 %v1422, 1.442695
  %v1475 = vpow.pop %v1474
  %v1476 = vmul.f32 %v1423, 1.442695
  %v1477 = vpow.pop %v1476
  %v1478 = vmul.f32 %v1424, 1.442695
  %v1479 = vpow.pop %v1478
  %v1480 = vmul.f32 %v1425, 1.442695
  %v1481 = vpow.pop %v1480
  %v1482 = vmul.f32 %v1426, 1.442695
  %v1483 = vpow.pop %v1482
  %v1484 = vmul.f32 %v1427, 1.442695
  %v1485 = vpow.pop %v1484
  %v1486 = vmul.f32 %v1428, 1.442695
  %v1487 = vpow.pop %v1486
  %v1488 = vmul.f32 %v1429, 1.442695
  %v1489 = vpow.pop %v1488
  %v1490 = vmul.f32 %v1430, 1.442695
  %v1491 = vpow.pop %v1490
  %v1492 = vmul.f32 %v1431, 1.442695
  %v1493 = vpow.pop %v1492
  %v1494 = vmul.f32 %v1432, 1.442695
  %v1495 = vpow.pop %v1494
  %v1496 = vmul.f32 %v1433, 1.442695
  %v1497 = vpow.pop %v1496
  %v1498 = vadd.f32 %v1435, 1.0
  %v1499 = vadd.f32 %v1437, 1.0
  %v1500 = vadd.f32 %v1439, 1.0
  %v1501 = vadd.f32 %v1441, 1.0
  %v1502 = vadd.f32 %v1443, 1.0
  %v1503 = vadd.f32 %v1445, 1.0
  %v1504 = vadd.f32 %v1447, 1.0
  %v1505 = vadd.f32 %v1449, 1.0
  %v1506 = vadd.f32 %v1451, 1.0
  %v1507 = vadd.f32 %v1453, 1.0
  %v1508 = vadd.f32 %v1455, 1.0
  %v1509 = vadd.f32 %v1457, 1.0
  %v1510 = vadd.f32 %v1459, 1.0
  %v1511 = vadd.f32 %v1461, 1.0
  %v1512 = vadd.f32 %v1463, 1.0
  %v1513 = vadd.f32 %v1465, 1.0
  %v1514 = vadd.f32 %v1467, 1.0
  %v1515 = vadd.f32 %v1469, 1.0
  %v1516 = vadd.f32 %v1471, 1.0
  %v1517 = vadd.f32 %v1473, 1.0
  %v1518 = vadd.f32 %v1475, 1.0
  %v1519 = vadd.f32 %v1477, 1.0
  %v1520 = vadd.f32 %v1479, 1.0
  %v1521 = vadd.f32 %v1481, 1.0
  %v1522 = vadd.f32 %v1483, 1.0
  %v1523 = vadd.f32 %v1485, 1.0
  %v1524 = vadd.f32 %v1487, 1.0
  %v1525 = vadd.f32 %v1489, 1.0
  %v1526 = vadd.f32 %v1491, 1.0
  %v1527 = vadd.f32 %v1493, 1.0
  %v1528 = vadd.f32 %v1495, 1.0
  %v1529 = vadd.f32 %v1497, 1.0
  %v1530 = vrcp.pop %v1498
  %v1531 = vmul.f32 1.0, %v1530
  %v1532 = vrcp.pop %v1499
  %v1533 = vmul.f32 1.0, %v1532
  %v1534 = vrcp.pop %v1500
  %v1535 = vmul.f32 1.0, %v1534
  %v1536 = vrcp.pop %v1501
  %v1537 = vmul.f32 1.0, %v1536
  %v1538 = vrcp.pop %v1502
  %v1539 = vmul.f32 1.0, %v1538
  %v1540 = vrcp.pop %v1503
  %v1541 = vmul.f32 1.0, %v1540
  %v1542 = vrcp.pop %v1504
  %v1543 = vmul.f32 1.0, %v1542
  %v1544 = vrcp.pop %v1505
  %v1545 = vmul.f32 1.0, %v1544
  %v1546 = vrcp.pop %v1506
  %v1547 = vmul.f32 1.0, %v1546
  %v1548 = vrcp.pop %v1507
  %v1549 = vmul.f32 1.0, %v1548
  %v1550 = vrcp.pop %v1508
  %v1551 = vmul.f32 1.0, %v1550
  %v1552 = vrcp.pop %v1509
  %v1553 = vmul.f32 1.0, %v1552
  %v1554 = vrcp.pop %v1510
  %v1555 = vmul.f32 1.0, %v1554
  %v1556 = vrcp.pop %v1511
  %v1557 = vmul.f32 1.0, %v1556
  %v1558 = vrcp.pop %v1512
  %v1559 = vmul.f32 1.0, %v1558
  %v1560 = vrcp.pop %v1513
  %v1561 = vmul.f32 1.0, %v1560
  %v1562 = vrcp.pop %v1514
  %v1563 = vmul.f32 1.0, %v1562
  %v1564 = vrcp.pop %v1515
  %v1565 = vmul.f32 1.0, %v1564
  %v1566 = vrcp.pop %v1516
  %v1567 = vmul.f32 1.0, %v1566
  %v1568 = vrcp.pop %v1517
  %v1569 = vmul.f32 1.0, %v1568
  %v1570 = vrcp.pop %v1518
  %v1571 = vmul.f32 1.0, %v1570
  %v1572 = vrcp.pop %v1519
  %v1573 = vmul.f32 1.0, %v1572
  %v1574 = vrcp.pop %v1520
  %v1575 = vmul.f32 1.0, %v1574
  %v1576 = vrcp.pop %v1521
  %v1577 = vmul.f32 1.0, %v1576
  %v1578 = vrcp.pop %v1522
  %v1579 = vmul.f32 1.0, %v1578
  %v1580 = vrcp.pop %v1523
  %v1581 = vmul.f32 1.0, %v1580
  %v1582 = vrcp.pop %v1524
  %v1583 = vmul.f32 1.0, %v1582
  %v1584 = vrcp.pop %v1525
  %v1585 = vmul.f32 1.0, %v1584
  %v1586 = vrcp.pop %v1526
  %v1587 = vmul.f32 1.0, %v1586
  %v1588 = vrcp.pop %v1527
  %v1589 = vmul.f32 1.0, %v1588
  %v1590 = vrcp.pop %v1528
  %v1591 = vmul.f32 1.0, %v1590
  %v1592 = vrcp.pop %v1529
  %v1593 = vmul.f32 1.0, %v1592
  %vm1594 = vcmask 7168
  %1595 = vst.msk [vmem:[%s9] sm:$0xff] %vm1594, %v1531
  %1596 = vst.msk [vmem:[%s9 + $0x8] sm:$0xff] %vm1594, %v1533
  %1597 = vst.msk [vmem:[%s9 + $0x10] sm:$0xff] %vm1594, %v1535
  %1598 = vst.msk [vmem:[%s9 + $0x18] sm:$0xff] %vm1594, %v1537
  %1599 = vst.msk [vmem:[%s9 + $0x20] sm:$0xff] %vm1594, %v1539
  %1600 = vst.msk [vmem:[%s9 + $0x28] sm:$0xff] %vm1594, %v1541
  %1601 = vst.msk [vmem:[%s9 + $0x30] sm:$0xff] %vm1594, %v1543
  %1602 = vst.msk [vmem:[%s9 + $0x38] sm:$0xff] %vm1594, %v1545
  %1603 = vst.msk [vmem:[%s9 + $0x40] sm:$0xff] %vm1594, %v1547
  %1604 = vst.msk [vmem:[%s9 + $0x48] sm:$0xff] %vm1594, %v1549
  %1605 = vst.msk [vmem:[%s9 + $0x50] sm:$0xff] %vm1594, %v1551
  %1606 = vst.msk [vmem:[%s9 + $0x58] sm:$0xff] %vm1594, %v1553
  %1607 = vst.msk [vmem:[%s9 + $0x60] sm:$0xff] %vm1594, %v1555
  %1608 = vst.msk [vmem:[%s9 + $0x68] sm:$0xff] %vm1594, %v1557
  %1609 = vst.msk [vmem:[%s9 + $0x70] sm:$0xff] %vm1594, %v1559
  %1610 = vst.msk [vmem:[%s9 + $0x78] sm:$0xff] %vm1594, %v1561
  %1611 = vst.msk [vmem:[%s9 + $0x80] sm:$0xff] %vm1594, %v1563
  %1612 = vst.msk [vmem:[%s9 + $0x88] sm:$0xff] %vm1594, %v1565
  %1613 = vst.msk [vmem:[%s9 + $0x90] sm:$0xff] %vm1594, %v1567
  %1614 = vst.msk [vmem:[%s9 + $0x98] sm:$0xff] %vm1594, %v1569
  %1615 = vst.msk [vmem:[%s9 + $0xa0] sm:$0xff] %vm1594, %v1571
  %1616 = vst.msk [vmem:[%s9 + $0xa8] sm:$0xff] %vm1594, %v1573
  %1617 = vst.msk [vmem:[%s9 + $0xb0] sm:$0xff] %vm1594, %v1575
  %1618 = vst.msk [vmem:[%s9 + $0xb8] sm:$0xff] %vm1594, %v1577
  %1619 = vst.msk [vmem:[%s9 + $0xc0] sm:$0xff] %vm1594, %v1579
  %1620 = vst.msk [vmem:[%s9 + $0xc8] sm:$0xff] %vm1594, %v1581
  %1621 = vst.msk [vmem:[%s9 + $0xd0] sm:$0xff] %vm1594, %v1583
  %1622 = vst.msk [vmem:[%s9 + $0xd8] sm:$0xff] %vm1594, %v1585
  %1623 = vst.msk [vmem:[%s9 + $0xe0] sm:$0xff] %vm1594, %v1587
  %1624 = vst.msk [vmem:[%s9 + $0xe8] sm:$0xff] %vm1594, %v1589
  %1625 = vst.msk [vmem:[%s9 + $0xf0] sm:$0xff] %vm1594, %v1591
  %1626 = vst.msk [vmem:[%s9 + $0xf8] sm:$0xff] %vm1594, %v1593
  // Predicated region
  $region38: #{tpu_custom_call.1} parent=0 // pred_check
    _
  $region39: #{tpu_custom_call.1} parent=0 // pred_check_branch
    %1628 = sbr.rel (0) target = $region41
  $region40: #{tpu_custom_call.1} parent=0 // pred_region
    _
  $region41: #{tpu_custom_call.1} parent=0 // pred_fallthru
    _
  // Predicated region
  $region42: #{tpu_custom_call.1} parent=0 // pred_check
    _
  $region43: #{tpu_custom_call.1} parent=0 // pred_check_branch
    %1630 = sbr.rel (0) target = $region45
  $region44: #{tpu_custom_call.1} parent=0 // pred_region
    _
  $region45: #{tpu_custom_call.1} parent=0 // pred_fallthru
    _

</llo_original>
